<compile_context>
chip_gen: v6e
topology: v6e:2x2x1
jax: 0.10.0
libtpu: 0.0.40
codegen_flags: <defaults>
</compile_context>

<pallas_src>
import jax
import jax.numpy as jnp
from jax.experimental import pallas as pl
from jax.experimental.pallas import tpu as pltpu


# ---------------------------------------------------------------------------
# Generation-aware configuration
# ---------------------------------------------------------------------------

def _hw_config():
    """Pick point-tile cap and scoped VMEM limit per TPU generation."""
    try:
        vmem_bytes = int(pltpu.get_tpu_info().vmem_capacity_bytes)
    except Exception:
        vmem_bytes = 0
    if vmem_bytes > 64 * 1024 * 1024:
        # v5e / v6e: 128 MiB VMEM per TensorCore -> bigger point tiles.
        return {"tile_cap": 2048, "vmem_limit": 64 * 1024 * 1024}
    # v7x (64 MiB per TensorCore) or unknown: stay conservative.
    return {"tile_cap": 1024, "vmem_limit": 48 * 1024 * 1024}


def _pick_point_tile(n, cap):
    """Largest divisor of n that is a multiple of 8 and <= cap.

    Falls back to the full extent n (block == full dim is always legal), so
    the (8,128) BlockSpec constraint is never violated.
    """
    best = None
    for d in range(8, min(n, cap) + 1, 8):
        if n % d == 0:
            best = d
    return best if best is not None else n


def _relu_dot(x, w, b):
    """relu(x @ w + b) with bf16 MXU operands and f32 accumulation."""
    y = jnp.dot(x.astype(jnp.bfloat16), w,
                preferred_element_type=jnp.float32) + b
    return jnp.maximum(y, 0.0)


# ---------------------------------------------------------------------------
# Stage 1: conv1 -> conv2 -> t_conv1 -> t_conv2 -> t_conv3 -> maxpool
# ---------------------------------------------------------------------------

def _stage1_kernel(x_ref, w1_ref, b1_ref, w2_ref, b2_ref,
                   tw1_ref, tb1_ref, tw2_ref, tb2_ref, tw3_ref, tb3_ref,
                   tpool_ref):
    nt = pl.program_id(2)

    x = x_ref[0]                                            # (tn, 8) f32, xyz zero-padded
    h = _relu_dot(x, w1_ref[...], b1_ref[...])              # conv1   -> (tn, 64)
    h = _relu_dot(h, w2_ref[...], b2_ref[...])              # conv2   -> (tn, 64)

    t = _relu_dot(h, tw1_ref[...], tb1_ref[...])            # t_conv1 -> (tn, 64)
    t = _relu_dot(t, tw2_ref[...], tb2_ref[...])            # t_conv2 -> (tn, 128)
    t = _relu_dot(t, tw3_ref[...], tb3_ref[...])            # t_conv3 -> (tn, 1024)
    tile_max = jnp.max(t, axis=0, keepdims=True)            # (1, 1024)

    @pl.when(nt == 0)
    def _():
        tpool_ref[0, 0] = tile_max

    @pl.when(nt > 0)
    def _():
        tpool_ref[0, 0] = jnp.maximum(tpool_ref[0, 0], tile_max)


def stage1(points_padded, p, tn, n_splits, cfg):
    """points_padded: (B, N, 8) f32 -> t_pool (B, 1024) f32."""
    B, N, _ = points_padded.shape
    nt_per_split = (N // tn) // n_splits
    grid = (n_splits, B, nt_per_split)
    pts_map = lambda s, b, n: (b, s * nt_per_split + n, 0)
    const = lambda s, b, n: (0, 0)

    tpool = pl.pallas_call(
        _stage1_kernel,
        out_shape=jax.ShapeDtypeStruct((n_splits, B, 1, 1024), jnp.float32),
        grid=grid,
        in_specs=[
            pl.BlockSpec((1, tn, 8), pts_map),
            pl.BlockSpec((8, 64), const),
            pl.BlockSpec((1, 64), const),
            pl.BlockSpec((64, 64), const),
            pl.BlockSpec((1, 64), const),
            pl.BlockSpec((64, 64), const),
            pl.BlockSpec((1, 64), const),
            pl.BlockSpec((64, 128), const),
            pl.BlockSpec((1, 128), const),
            pl.BlockSpec((128, 1024), const),
            pl.BlockSpec((1, 1024), const),
        ],
        out_specs=pl.BlockSpec((1, 1, 1, 1024), lambda s, b, n: (s, b, 0, 0)),
        compiler_params=pltpu.CompilerParams(
            dimension_semantics=("parallel", "parallel", "arbitrary"),
            vmem_limit_bytes=cfg["vmem_limit"],
        ),
    )(points_padded,
      p["conv1_w"], p["conv1_b"], p["conv2_w"], p["conv2_b"],
      p["t_conv1_w"], p["t_conv1_b"], p["t_conv2_w"], p["t_conv2_b"],
      p["t_conv3_w"], p["t_conv3_b"])
    # Combine the point-axis splits (tiny XLA max) and squeeze.
    return jnp.max(tpool, axis=0).reshape(B, 1024)


# ---------------------------------------------------------------------------
# T-Net FC head: t_fc1 -> t_fc2 -> t_fc3 (eye bias AND conv3 weight prefolded)
# Output is W3_eff = T @ conv3_W per batch, flattened to (B, 4096), bf16.
# ---------------------------------------------------------------------------

def _tnet_head_kernel(x_ref, w1_ref, b1_ref, w2_ref, b2_ref, w3_ref, b3_ref,
                      o_ref):
    h = _relu_dot(x_ref[...], w1_ref[...], b1_ref[...])     # (B, 512)
    h = _relu_dot(h, w2_ref[...], b2_ref[...])              # (B, 256)
    o_ref[...] = (jnp.dot(h.astype(jnp.bfloat16), w3_ref[...],
                          preferred_element_type=jnp.float32)
                  + b3_ref[...]).astype(o_ref.dtype)         # (B, 4096)


def tnet_head(t_pool, p, cfg):
    """(B, 1024) -> W3_eff (B, 64, 64) bf16 = feat_trans @ conv3_w."""
    B = t_pool.shape[0]
    out = pl.pallas_call(
        _tnet_head_kernel,
        out_shape=jax.ShapeDtypeStruct((B, 64 * 64), jnp.bfloat16),
        grid=(1,),
        in_specs=[
            pl.BlockSpec((B, 1024), lambda i: (0, 0)),
            pl.BlockSpec((1024, 512), lambda i: (0, 0)),
            pl.BlockSpec((1, 512), lambda i: (0, 0)),
            pl.BlockSpec((512, 256), lambda i: (0, 0)),
            pl.BlockSpec((1, 256), lambda i: (0, 0)),
            pl.BlockSpec((256, 64 * 64), lambda i: (0, 0)),
            pl.BlockSpec((1, 64 * 64), lambda i: (0, 0)),
        ],
        out_specs=pl.BlockSpec((B, 64 * 64), lambda i: (0, 0)),
        compiler_params=pltpu.CompilerParams(
            dimension_semantics=("arbitrary",),
            vmem_limit_bytes=cfg["vmem_limit"],
        ),
    )(t_pool, p["t_fc1_w"], p["t_fc1_b"], p["t_fc2_w"], p["t_fc2_b"],
      p["t_fc3_w_fold"], p["t_fc3_b_fold"])
    return out.reshape(B, 64, 64)


# ---------------------------------------------------------------------------
# Stage 2: conv1/conv2 recompute -> conv3 (prefolded W3_eff) -> conv4 -> conv5
#          -> maxpool over points
# ---------------------------------------------------------------------------

def _stage2_kernel(x_ref, w1_ref, b1_ref, w2_ref, b2_ref,
                   w3e_ref, b3_ref, w4_ref, b4_ref, w5_ref, b5_ref,
                   pool_ref):
    nt = pl.program_id(2)

    x = x_ref[0]                                            # (tn, 8)
    h = _relu_dot(x, w1_ref[...], b1_ref[...])              # conv1 recompute
    h = _relu_dot(h, w2_ref[...], b2_ref[...])              # conv2 recompute
    # conv3 with the per-batch feature transform prefolded into its weight.
    h = _relu_dot(h, w3e_ref[0], b3_ref[...])               # (tn, 64)
    h = _relu_dot(h, w4_ref[...], b4_ref[...])              # conv4 -> (tn, 128)
    h = _relu_dot(h, w5_ref[...], b5_ref[...])              # conv5 -> (tn, 1024)
    tile_max = jnp.max(h, axis=0, keepdims=True)            # (1, 1024)

    @pl.when(nt == 0)
    def _():
        pool_ref[0, 0] = tile_max

    @pl.when(nt > 0)
    def _():
        pool_ref[0, 0] = jnp.maximum(pool_ref[0, 0], tile_max)


def stage2(points_padded, w3_eff, p, tn, n_splits, cfg):
    """points (B, N, 8), W3_eff (B, 64, 64) bf16 -> pooled (B, 1024) f32."""
    B, N, _ = points_padded.shape
    nt_per_split = (N // tn) // n_splits
    grid = (n_splits, B, nt_per_split)
    pts_map = lambda s, b, n: (b, s * nt_per_split + n, 0)
    const = lambda s, b, n: (0, 0)

    pooled = pl.pallas_call(
        _stage2_kernel,
        out_shape=jax.ShapeDtypeStruct((n_splits, B, 1, 1024), jnp.float32),
        grid=grid,
        in_specs=[
            pl.BlockSpec((1, tn, 8), pts_map),
            pl.BlockSpec((8, 64), const),
            pl.BlockSpec((1, 64), const),
            pl.BlockSpec((64, 64), const),
            pl.BlockSpec((1, 64), const),
            pl.BlockSpec((1, 64, 64), lambda s, b, n: (b, 0, 0)),
            pl.BlockSpec((1, 64), const),
            pl.BlockSpec((64, 128), const),
            pl.BlockSpec((1, 128), const),
            pl.BlockSpec((128, 1024), const),
            pl.BlockSpec((1, 1024), const),
        ],
        out_specs=pl.BlockSpec((1, 1, 1, 1024), lambda s, b, n: (s, b, 0, 0)),
        compiler_params=pltpu.CompilerParams(
            dimension_semantics=("parallel", "parallel", "arbitrary"),
            vmem_limit_bytes=cfg["vmem_limit"],
        ),
    )(points_padded, p["conv1_w"], p["conv1_b"], p["conv2_w"], p["conv2_b"],
      w3_eff, p["conv3_b"], p["conv4_w"], p["conv4_b"],
      p["conv5_w"], p["conv5_b"])
    return jnp.max(pooled, axis=0).reshape(B, 1024)


# ---------------------------------------------------------------------------
# Classifier head: fc1 -> fc2 -> fc3 -> log_softmax (single call)
# ---------------------------------------------------------------------------

def _cls_head_kernel(x_ref, w1_ref, b1_ref, w2_ref, b2_ref, w3_ref, b3_ref,
                     o_ref):
    h = _relu_dot(x_ref[...], w1_ref[...], b1_ref[...])     # (B, 512)
    # drop1: eval-mode identity
    h = _relu_dot(h, w2_ref[...], b2_ref[...])              # (B, 256)
    # drop2: eval-mode identity
    logits = (jnp.dot(h.astype(jnp.bfloat16), w3_ref[...],
                      preferred_element_type=jnp.float32)
              + b3_ref[...])                                 # (B, 10)
    m = jnp.max(logits, axis=1, keepdims=True)
    z = logits - m
    lse = jnp.log(jnp.sum(jnp.exp(z), axis=1, keepdims=True))
    o_ref[...] = z - lse


def cls_head(pooled, p, cfg):
    """(B, 1024) -> log-probs (B, 10)."""
    B = pooled.shape[0]
    return pl.pallas_call(
        _cls_head_kernel,
        out_shape=jax.ShapeDtypeStruct((B, 10), jnp.float32),
        grid=(1,),
        in_specs=[
            pl.BlockSpec((B, 1024), lambda i: (0, 0)),
            pl.BlockSpec((1024, 512), lambda i: (0, 0)),
            pl.BlockSpec((1, 512), lambda i: (0, 0)),
            pl.BlockSpec((512, 256), lambda i: (0, 0)),
            pl.BlockSpec((1, 256), lambda i: (0, 0)),
            pl.BlockSpec((256, 10), lambda i: (0, 0)),
            pl.BlockSpec((1, 10), lambda i: (0, 0)),
        ],
        out_specs=pl.BlockSpec((B, 10), lambda i: (0, 0)),
        compiler_params=pltpu.CompilerParams(
            dimension_semantics=("arbitrary",),
            vmem_limit_bytes=cfg["vmem_limit"],
        ),
    )(pooled, p["fc1_w"], p["fc1_b"], p["fc2_w"], p["fc2_b"],
      p["fc3_w"], p["fc3_b"])


# ---------------------------------------------------------------------------
# Parameters (deterministic init; shapes follow the PyTorch module)
# ---------------------------------------------------------------------------

def init_params(key):
    # conv weights stored pre-transposed as (C_in*kw, C_out), f32 at init.
    layer_shapes = [
        ("conv1", 3, 64),        # Conv2d(1, 64, (1, 3)) acting on xyz
        ("conv2", 64, 64),       # Conv2d(64, 64, (1, 1))
        ("conv3", 64, 64),
        ("conv4", 64, 128),
        ("conv5", 128, 1024),
        ("fc1", 1024, 512),
        ("fc2", 512, 256),
        ("fc3", 256, 10),
        ("t_conv1", 64, 64),     # feature_transform_net
        ("t_conv2", 64, 128),
        ("t_conv3", 128, 1024),
        ("t_fc1", 1024, 512),
        ("t_fc2", 512, 256),
        ("t_fc3", 256, 64 * 64),
    ]
    raw = {}
    keys = jax.random.split(key, 2 * len(layer_shapes))
    for idx, (name, fan_in, fan_out) in enumerate(layer_shapes):
        scale = 1.0 / jnp.sqrt(jnp.float32(fan_in))
        raw[name + "_w"] = (
            jax.random.normal(keys[2 * idx], (fan_in, fan_out), jnp.float32) * scale
        )
        raw[name + "_b"] = (
            jax.random.normal(keys[2 * idx + 1], (1, fan_out), jnp.float32) * 0.01
        )

    # Zero-pad conv1's K=3 contraction to 8 (input xyz is zero-padded to match).
    raw["conv1_w"] = jnp.pad(raw["conv1_w"], ((0, 5), (0, 0)))

    # Fold (a) the T-Net identity bias eye(64) and (b) conv3's weight W3 into
    # t_fc3 at param-prep time (all in f32):
    #   flatten(reshape(h @ Wfc3 + b + eye) @ W3)
    #     == h @ Wfold + bfold
    # so stage2's conv3 only needs the per-batch result W3_eff = T @ W3.
    w3 = raw["conv3_w"]                                           # (64, 64)
    t_fc3_b_eye = raw["t_fc3_b"] + jnp.eye(64, dtype=jnp.float32).reshape(1, -1)
    t_fc3_w_fold = jnp.einsum(
        "cij,jk->cik", raw["t_fc3_w"].reshape(256, 64, 64), w3
    ).reshape(256, 64 * 64)
    t_fc3_b_fold = (t_fc3_b_eye.reshape(64, 64) @ w3).reshape(1, 64 * 64)

    # Final params: matmul weights in bf16 (native MXU), biases in f32.
    params = {}
    matmul_weights = ["conv1", "conv2", "conv4", "conv5",
                      "fc1", "fc2", "fc3",
                      "t_conv1", "t_conv2", "t_conv3", "t_fc1", "t_fc2"]
    for name in matmul_weights:
        params[name + "_w"] = raw[name + "_w"].astype(jnp.bfloat16)
        params[name + "_b"] = raw[name + "_b"]
    params["conv3_b"] = raw["conv3_b"]                      # conv3_w lives in the fold
    params["t_fc3_w_fold"] = t_fc3_w_fold.astype(jnp.bfloat16)
    params["t_fc3_b_fold"] = t_fc3_b_fold
    return params


# ---------------------------------------------------------------------------
# Forward pass
# ---------------------------------------------------------------------------

def pointnet_forward(point_cloud, params):
    """point_cloud: (B, N, 3) float32 -> log-probs (B, 10)."""
    B, N, _ = point_cloud.shape
    cfg = _hw_config()
    tn = _pick_point_tile(N, cfg["tile_cap"])
    n_tiles = N // tn
    # Split the point axis in two parallel halves when the batch alone would
    # leave a v7x TensorCore idle (small or odd B).
    n_splits = 2 if (n_tiles % 2 == 0 and n_tiles >= 2 and (B <= 2 or B % 2 == 1)) else 1

    # Zero-pad xyz (K=3) to 8 channels so the conv1 contraction is layout-friendly.
    x = jnp.pad(point_cloud, ((0, 0), (0, 0), (0, 5)))            # (B, N, 8)

    # conv1 -> conv2 -> T-Net convs -> maxpool, all fused (no HBM intermediate).
    t_pool = stage1(x, params, tn, n_splits, cfg)                 # (B, 1024)

    # T-Net FC head; emits per-batch W3_eff = feat_trans @ conv3_w directly.
    w3_eff = tnet_head(t_pool, params, cfg)                       # (B, 64, 64) bf16

    # conv1/conv2 recomputed per tile, conv3 (prefolded) -> conv4 -> conv5 -> maxpool.
    pooled = stage2(x, w3_eff, params, tn, n_splits, cfg)         # (B, 1024)

    # fc1 -> fc2 -> fc3 -> log_softmax fused (dropout = eval-mode identity).
    return cls_head(pooled, params, cfg)                          # (B, 10)


# ---------------------------------------------------------------------------
# Main
# ---------------------------------------------------------------------------

if __name__ == "__main__":
    key = jax.random.PRNGKey(0)
    k_params, k_data = jax.random.split(key)

    batch_size = 2
    num_point = 8
    point_cloud = jax.random.normal(
        k_data, (batch_size, num_point, 3), jnp.float32)

    params = init_params(k_params)

    logits = pointnet_forward(point_cloud, params)
    jax.block_until_ready(logits)

    assert logits.shape == (batch_size, 10)
    assert logits.dtype == jnp.float32
    assert bool(jnp.all(jnp.isfinite(logits)))
    # log-softmax rows should sum to ~1 in probability space
    assert bool(jnp.all(jnp.abs(jnp.sum(jnp.exp(logits), axis=1) - 1.0) < 1e-4))

    print("KERNEL_OK")
</pallas_src>

<mosaic_0001>
module attributes {stable_mosaic.version = 11 : i64} {
  func.func @_stage1_kernel(%arg0: i32, %arg1: i32, %arg2: i32, %arg3: memref<1x8x8xf32, #tpu.memory_space<vmem>>, %arg4: memref<8x64xbf16, #tpu.memory_space<vmem>>, %arg5: memref<1x64xf32, #tpu.memory_space<vmem>>, %arg6: memref<64x64xbf16, #tpu.memory_space<vmem>>, %arg7: memref<1x64xf32, #tpu.memory_space<vmem>>, %arg8: memref<64x64xbf16, #tpu.memory_space<vmem>>, %arg9: memref<1x64xf32, #tpu.memory_space<vmem>>, %arg10: memref<64x128xbf16, #tpu.memory_space<vmem>>, %arg11: memref<1x128xf32, #tpu.memory_space<vmem>>, %arg12: memref<128x1024xbf16, #tpu.memory_space<vmem>>, %arg13: memref<1x1024xf32, #tpu.memory_space<vmem>>, %arg14: memref<1x1x1x1024xf32, #tpu.memory_space<vmem>>) attributes {dimension_semantics = [#tpu.dimension_semantics<parallel>, #tpu.dimension_semantics<parallel>, #tpu.dimension_semantics<arbitrary>], iteration_bounds = array<i64: 1, 2, 1>, scalar_prefetch = 0 : i64, scratch_operands = 0 : i64, tpu.core_type = #tpu.core_type<tc>, window_params = [{transform_indices = @transform_0, window_bounds = array<i64: 1, 8, 8>}, {pipeline_mode = #tpu.pipeline_mode<synchronous>, transform_indices = @transform_1, window_bounds = array<i64: 8, 64>}, {pipeline_mode = #tpu.pipeline_mode<synchronous>, transform_indices = @transform_2, window_bounds = array<i64: 1, 64>}, {pipeline_mode = #tpu.pipeline_mode<synchronous>, transform_indices = @transform_3, window_bounds = array<i64: 64, 64>}, {pipeline_mode = #tpu.pipeline_mode<synchronous>, transform_indices = @transform_4, window_bounds = array<i64: 1, 64>}, {pipeline_mode = #tpu.pipeline_mode<synchronous>, transform_indices = @transform_5, window_bounds = array<i64: 64, 64>}, {pipeline_mode = #tpu.pipeline_mode<synchronous>, transform_indices = @transform_6, window_bounds = array<i64: 1, 64>}, {pipeline_mode = #tpu.pipeline_mode<synchronous>, transform_indices = @transform_7, window_bounds = array<i64: 64, 128>}, {pipeline_mode = #tpu.pipeline_mode<synchronous>, transform_indices = @transform_8, window_bounds = array<i64: 1, 128>}, {pipeline_mode = #tpu.pipeline_mode<synchronous>, transform_indices = @transform_9, window_bounds = array<i64: 128, 1024>}, {pipeline_mode = #tpu.pipeline_mode<synchronous>, transform_indices = @transform_10, window_bounds = array<i64: 1, 1024>}, {transform_indices = @transform_11, window_bounds = array<i64: 1, 1, 1, 1024>}]} {
    %c0 = arith.constant 0 : index
    %c0_0 = arith.constant 0 : index
    %c0_1 = arith.constant 0 : index
    %0 = vector.load %arg3[%c0, %c0_0, %c0_1] : memref<1x8x8xf32, #tpu.memory_space<vmem>>, vector<1x8x8xf32>
    %1 = vector.shape_cast %0 : vector<1x8x8xf32> to vector<8x8xf32>
    %c0_2 = arith.constant 0 : index
    %c0_3 = arith.constant 0 : index
    %2 = vector.load %arg4[%c0_2, %c0_3] : memref<8x64xbf16, #tpu.memory_space<vmem>>, vector<8x64xbf16>
    %c0_4 = arith.constant 0 : index
    %c0_5 = arith.constant 0 : index
    %3 = vector.load %arg5[%c0_4, %c0_5] : memref<1x64xf32, #tpu.memory_space<vmem>>, vector<1x64xf32>
    %4 = arith.truncf %1 : vector<8x8xf32> to vector<8x8xbf16>
    %cst = arith.constant dense<0.000000e+00> : vector<8x64xf32>
    %5 = tpu.matmul %4, %2, %cst {dimension_numbers = #tpu.dot_dimension_numbers<[1], [0], [0], [1], [0, 0, 1, 1], [], []>} : vector<8x8xbf16>, vector<8x64xbf16>, vector<8x64xf32> -> vector<8x64xf32>
    %6 = vector.broadcast %3 : vector<1x64xf32> to vector<8x64xf32>
    %7 = arith.addf %5, %6 : vector<8x64xf32>
    %cst_6 = arith.constant 0.000000e+00 : f32
    %8 = vector.broadcast %cst_6 : f32 to vector<8x64xf32>
    %9 = arith.maximumf %7, %8 : vector<8x64xf32>
    %c0_7 = arith.constant 0 : index
    %c0_8 = arith.constant 0 : index
    %10 = vector.load %arg6[%c0_7, %c0_8] : memref<64x64xbf16, #tpu.memory_space<vmem>>, vector<64x64xbf16>
    %c0_9 = arith.constant 0 : index
    %c0_10 = arith.constant 0 : index
    %11 = vector.load %arg7[%c0_9, %c0_10] : memref<1x64xf32, #tpu.memory_space<vmem>>, vector<1x64xf32>
    %12 = arith.truncf %9 : vector<8x64xf32> to vector<8x64xbf16>
    %cst_11 = arith.constant dense<0.000000e+00> : vector<8x64xf32>
    %13 = tpu.matmul %12, %10, %cst_11 {dimension_numbers = #tpu.dot_dimension_numbers<[1], [0], [0], [1], [0, 0, 1, 1], [], []>} : vector<8x64xbf16>, vector<64x64xbf16>, vector<8x64xf32> -> vector<8x64xf32>
    %14 = vector.broadcast %11 : vector<1x64xf32> to vector<8x64xf32>
    %15 = arith.addf %13, %14 : vector<8x64xf32>
    %cst_12 = arith.constant 0.000000e+00 : f32
    %16 = vector.broadcast %cst_12 : f32 to vector<8x64xf32>
    %17 = arith.maximumf %15, %16 : vector<8x64xf32>
    %c0_13 = arith.constant 0 : index
    %c0_14 = arith.constant 0 : index
    %18 = vector.load %arg8[%c0_13, %c0_14] : memref<64x64xbf16, #tpu.memory_space<vmem>>, vector<64x64xbf16>
    %c0_15 = arith.constant 0 : index
    %c0_16 = arith.constant 0 : index
    %19 = vector.load %arg9[%c0_15, %c0_16] : memref<1x64xf32, #tpu.memory_space<vmem>>, vector<1x64xf32>
    %20 = arith.truncf %17 : vector<8x64xf32> to vector<8x64xbf16>
    %cst_17 = arith.constant dense<0.000000e+00> : vector<8x64xf32>
    %21 = tpu.matmul %20, %18, %cst_17 {dimension_numbers = #tpu.dot_dimension_numbers<[1], [0], [0], [1], [0, 0, 1, 1], [], []>} : vector<8x64xbf16>, vector<64x64xbf16>, vector<8x64xf32> -> vector<8x64xf32>
    %22 = vector.broadcast %19 : vector<1x64xf32> to vector<8x64xf32>
    %23 = arith.addf %21, %22 : vector<8x64xf32>
    %cst_18 = arith.constant 0.000000e+00 : f32
    %24 = vector.broadcast %cst_18 : f32 to vector<8x64xf32>
    %25 = arith.maximumf %23, %24 : vector<8x64xf32>
    %c0_19 = arith.constant 0 : index
    %c0_20 = arith.constant 0 : index
    %26 = vector.load %arg10[%c0_19, %c0_20] : memref<64x128xbf16, #tpu.memory_space<vmem>>, vector<64x128xbf16>
    %c0_21 = arith.constant 0 : index
    %c0_22 = arith.constant 0 : index
    %27 = vector.load %arg11[%c0_21, %c0_22] : memref<1x128xf32, #tpu.memory_space<vmem>>, vector<1x128xf32>
    %28 = arith.truncf %25 : vector<8x64xf32> to vector<8x64xbf16>
    %cst_23 = arith.constant dense<0.000000e+00> : vector<8x128xf32>
    %29 = tpu.matmul %28, %26, %cst_23 {dimension_numbers = #tpu.dot_dimension_numbers<[1], [0], [0], [1], [0, 0, 1, 1], [], []>} : vector<8x64xbf16>, vector<64x128xbf16>, vector<8x128xf32> -> vector<8x128xf32>
    %30 = vector.broadcast %27 : vector<1x128xf32> to vector<8x128xf32>
    %31 = arith.addf %29, %30 : vector<8x128xf32>
    %cst_24 = arith.constant 0.000000e+00 : f32
    %32 = vector.broadcast %cst_24 : f32 to vector<8x128xf32>
    %33 = arith.maximumf %31, %32 : vector<8x128xf32>
    %c0_25 = arith.constant 0 : index
    %c0_26 = arith.constant 0 : index
    %34 = vector.load %arg12[%c0_25, %c0_26] : memref<128x1024xbf16, #tpu.memory_space<vmem>>, vector<128x1024xbf16>
    %c0_27 = arith.constant 0 : index
    %c0_28 = arith.constant 0 : index
    %35 = vector.load %arg13[%c0_27, %c0_28] : memref<1x1024xf32, #tpu.memory_space<vmem>>, vector<1x1024xf32>
    %36 = arith.truncf %33 : vector<8x128xf32> to vector<8x128xbf16>
    %cst_29 = arith.constant dense<0.000000e+00> : vector<8x1024xf32>
    %37 = tpu.matmul %36, %34, %cst_29 {dimension_numbers = #tpu.dot_dimension_numbers<[1], [0], [0], [1], [0, 0, 1, 1], [], []>} : vector<8x128xbf16>, vector<128x1024xbf16>, vector<8x1024xf32> -> vector<8x1024xf32>
    %38 = vector.broadcast %35 : vector<1x1024xf32> to vector<8x1024xf32>
    %39 = arith.addf %37, %38 : vector<8x1024xf32>
    %cst_30 = arith.constant 0.000000e+00 : f32
    %40 = vector.broadcast %cst_30 : f32 to vector<8x1024xf32>
    %41 = arith.maximumf %39, %40 : vector<8x1024xf32>
    %cst_31 = arith.constant dense<0xFF800000> : vector<1024xf32>
    %42 = vector.multi_reduction <maximumf>, %41, %cst_31 [0] : vector<8x1024xf32> to vector<1024xf32>
    %43 = vector.shape_cast %42 : vector<1024xf32> to vector<1x1024xf32>
    %c0_i32 = arith.constant 0 : i32
    %44 = arith.cmpi eq, %arg2, %c0_i32 : i32
    %45 = arith.extui %44 : i1 to i32
    %c0_i32_32 = arith.constant 0 : i32
    %46 = arith.cmpi ne, %45, %c0_i32_32 : i32
    scf.if %46 {
      %c0_35 = arith.constant 0 : index
      %c0_36 = arith.constant 0 : index
      %c0_37 = arith.constant 0 : index
      %c0_38 = arith.constant 0 : index
      %50 = vector.load %arg14[%c0_35, %c0_36, %c0_37, %c0_38] : memref<1x1x1x1024xf32, #tpu.memory_space<vmem>>, vector<1x1x1x1024xf32>
      %51 = vector.shape_cast %50 : vector<1x1x1x1024xf32> to vector<1x1024xf32>
      %52 = vector.shape_cast %43 : vector<1x1024xf32> to vector<1x1x1x1024xf32>
      tpu.vector_store %arg14[%c0_35, %c0_36, %c0_37, %c0_38], %52 {strides = array<i32>} : memref<1x1x1x1024xf32, #tpu.memory_space<vmem>>, vector<1x1x1x1024xf32>,
    } else {
    }
    %c0_i32_33 = arith.constant 0 : i32
    %47 = arith.cmpi sgt, %arg2, %c0_i32_33 : i32
    %48 = arith.extui %47 : i1 to i32
    %c0_i32_34 = arith.constant 0 : i32
    %49 = arith.cmpi ne, %48, %c0_i32_34 : i32
    scf.if %49 {
      %c0_35 = arith.constant 0 : index
      %c0_36 = arith.constant 0 : index
      %c0_37 = arith.constant 0 : index
      %c0_38 = arith.constant 0 : index
      %50 = vector.load %arg14[%c0_35, %c0_36, %c0_37, %c0_38] : memref<1x1x1x1024xf32, #tpu.memory_space<vmem>>, vector<1x1x1x1024xf32>
      %51 = vector.shape_cast %50 : vector<1x1x1x1024xf32> to vector<1x1024xf32>
      %52 = arith.maximumf %51, %43 : vector<1x1024xf32>
      %c0_39 = arith.constant 0 : index
      %c0_40 = arith.constant 0 : index
      %c0_41 = arith.constant 0 : index
      %c0_42 = arith.constant 0 : index
      %53 = vector.load %arg14[%c0_39, %c0_40, %c0_41, %c0_42] : memref<1x1x1x1024xf32, #tpu.memory_space<vmem>>, vector<1x1x1x1024xf32>
      %54 = vector.shape_cast %53 : vector<1x1x1x1024xf32> to vector<1x1024xf32>
      %55 = vector.shape_cast %52 : vector<1x1024xf32> to vector<1x1x1x1024xf32>
      tpu.vector_store %arg14[%c0_39, %c0_40, %c0_41, %c0_42], %55 {strides = array<i32>} : memref<1x1x1x1024xf32, #tpu.memory_space<vmem>>, vector<1x1x1x1024xf32>,
    } else {
    }
    return
  }
  func.func @transform_0(%arg0: i32, %arg1: i32, %arg2: i32) -> (i32, i32, i32) {
    %c1_i32 = arith.constant 1 : i32
    %0 = arith.muli %arg0, %c1_i32 : i32
    %1 = arith.addi %0, %arg2 : i32
    %c0_i32 = arith.constant 0 : i32
    %c0_i32_0 = arith.constant 0 : i32
    return %arg1, %1, %c0_i32 : i32, i32, i32
  }
  func.func @transform_1(%arg0: i32, %arg1: i32, %arg2: i32) -> (i32, i32) {
    %c0_i32 = arith.constant 0 : i32
    %c0_i32_0 = arith.constant 0 : i32
    %c0_i32_1 = arith.constant 0 : i32
    return %c0_i32, %c0_i32_0 : i32, i32
  }
  func.func @transform_2(%arg0: i32, %arg1: i32, %arg2: i32) -> (i32, i32) {
    %c0_i32 = arith.constant 0 : i32
    %c0_i32_0 = arith.constant 0 : i32
    %c0_i32_1 = arith.constant 0 : i32
    return %c0_i32, %c0_i32_0 : i32, i32
  }
  func.func @transform_3(%arg0: i32, %arg1: i32, %arg2: i32) -> (i32, i32) {
    %c0_i32 = arith.constant 0 : i32
    %c0_i32_0 = arith.constant 0 : i32
    %c0_i32_1 = arith.constant 0 : i32
    return %c0_i32, %c0_i32_0 : i32, i32
  }
  func.func @transform_4(%arg0: i32, %arg1: i32, %arg2: i32) -> (i32, i32) {
    %c0_i32 = arith.constant 0 : i32
    %c0_i32_0 = arith.constant 0 : i32
    %c0_i32_1 = arith.constant 0 : i32
    return %c0_i32, %c0_i32_0 : i32, i32
  }
  func.func @transform_5(%arg0: i32, %arg1: i32, %arg2: i32) -> (i32, i32) {
    %c0_i32 = arith.constant 0 : i32
    %c0_i32_0 = arith.constant 0 : i32
    %c0_i32_1 = arith.constant 0 : i32
    return %c0_i32, %c0_i32_0 : i32, i32
  }
  func.func @transform_6(%arg0: i32, %arg1: i32, %arg2: i32) -> (i32, i32) {
    %c0_i32 = arith.constant 0 : i32
    %c0_i32_0 = arith.constant 0 : i32
    %c0_i32_1 = arith.constant 0 : i32
    return %c0_i32, %c0_i32_0 : i32, i32
  }
  func.func @transform_7(%arg0: i32, %arg1: i32, %arg2: i32) -> (i32, i32) {
    %c0_i32 = arith.constant 0 : i32
    %c0_i32_0 = arith.constant 0 : i32
    %c0_i32_1 = arith.constant 0 : i32
    return %c0_i32, %c0_i32_0 : i32, i32
  }
  func.func @transform_8(%arg0: i32, %arg1: i32, %arg2: i32) -> (i32, i32) {
    %c0_i32 = arith.constant 0 : i32
    %c0_i32_0 = arith.constant 0 : i32
    %c0_i32_1 = arith.constant 0 : i32
    return %c0_i32, %c0_i32_0 : i32, i32
  }
  func.func @transform_9(%arg0: i32, %arg1: i32, %arg2: i32) -> (i32, i32) {
    %c0_i32 = arith.constant 0 : i32
    %c0_i32_0 = arith.constant 0 : i32
    %c0_i32_1 = arith.constant 0 : i32
    return %c0_i32, %c0_i32_0 : i32, i32
  }
  func.func @transform_10(%arg0: i32, %arg1: i32, %arg2: i32) -> (i32, i32) {
    %c0_i32 = arith.constant 0 : i32
    %c0_i32_0 = arith.constant 0 : i32
    %c0_i32_1 = arith.constant 0 : i32
    return %c0_i32, %c0_i32_0 : i32, i32
  }
  func.func @transform_11(%arg0: i32, %arg1: i32, %arg2: i32) -> (i32, i32, i32, i32) {
    %c0_i32 = arith.constant 0 : i32
    %c0_i32_0 = arith.constant 0 : i32
    %c0_i32_1 = arith.constant 0 : i32
    return %arg0, %arg1, %c0_i32, %c0_i32_0 : i32, i32, i32, i32
  }
}

</mosaic_0001>

<llo_original>
// kernel: tpu_custom_call.1
$region0: #{tpu_custom_call.1}
  #allocation0 [shape = 'u32[]', space=smem, size = 0x4, offset = 0x4, fixed_abs, tag = 'smem constant byte address 0x4 - core index']
  #allocation1 [shape = 'u32[144,128]{1,0:T(1,128)}', space=vmem, size = 0x12000, scoped, tag = 'internal scratch']
  %s0 = inlined_call_operand.hbm [shape: f32[2,8,8], index: 0, kind: input, shape index: {}]
  %s1 = inlined_call_operand.hbm [shape: bf16[8,64], index: 1, kind: input, shape index: {}]
  %s2 = inlined_call_operand.vmem [shape: f32[1,64], index: 2, kind: input, shape index: {}]
  %s3 = inlined_call_operand.hbm [shape: bf16[64,64], index: 3, kind: input, shape index: {}]
  %s4 = inlined_call_operand.vmem [shape: f32[1,64], index: 4, kind: input, shape index: {}]
  %s5 = inlined_call_operand.hbm [shape: bf16[64,64], index: 5, kind: input, shape index: {}]
  %s6 = inlined_call_operand.vmem [shape: f32[1,64], index: 6, kind: input, shape index: {}]
  %s7 = inlined_call_operand.hbm [shape: bf16[64,128], index: 7, kind: input, shape index: {}]
  %s8 = inlined_call_operand.vmem [shape: f32[1,128], index: 8, kind: input, shape index: {}]
  %s9 = inlined_call_operand.hbm [shape: bf16[128,1024], index: 9, kind: input, shape index: {}]
  %s10 = inlined_call_operand.vmem [shape: f32[1,1024], index: 10, kind: input, shape index: {}]
  %s11 = inlined_call_operand.hbm [shape: f32[1,2,1,1024], index: 11, kind: output, shape index: {}]
  %s12 = sld [smem:[#allocation0]]
  $region109: #{tpu_custom_call.1} parent=0
    _
  %s14 = ssub.s32 1, %s12
  %s15 = scalar_select 0, %s14, %s12
  $region1: #{tpu_custom_call.1} parent=0
    #allocation2 [shape = 'u8[8192]{0}', space=vmem, size = 0x2000, scoped, tag = 'input window, operand 0']
    #allocation3 [shape = 's32[2]{0}', space=sflag, size = 0x8, scoped, tag = 'scoped memory for tpu_custom_call.1']
    #allocation4 [shape = 's32[2]{0}', space=sflag, size = 0x8, scoped, tag = 'scoped memory for tpu_custom_call.1']
    #allocation5 [shape = 'u8[2048]{0}', space=vmem, size = 0x800, scoped, tag = 'input window, operand 1, single buffered']
    #allocation6 [shape = 's32[1]{0}', space=sflag, size = 0x4, scoped, tag = 'scoped memory for tpu_custom_call.1']
    #allocation7 [shape = 'u8[16384]{0}', space=vmem, size = 0x4000, scoped, tag = 'input window, operand 3, single buffered']
    #allocation8 [shape = 'u8[16384]{0}', space=vmem, size = 0x4000, scoped, tag = 'input window, operand 5, single buffered']
    #allocation9 [shape = 's32[1]{0}', space=sflag, size = 0x4, scoped, tag = 'scoped memory for tpu_custom_call.1']
    #allocation10 [shape = 'u8[16384]{0}', space=vmem, size = 0x4000, scoped, tag = 'input window, operand 7, single buffered']
    #allocation11 [shape = 'u8[262144]{0}', space=vmem, size = 0x40000, scoped, tag = 'input window, operand 9, single buffered']
    #allocation12 [shape = 's32[1]{0}', space=sflag, size = 0x4, scoped, tag = 'scoped memory for tpu_custom_call.1']
    #allocation13 [shape = 'u8[8192]{0}', space=vmem, size = 0x2000, scoped, tag = 'output window, operand 0']
    %16 = vsyncpa [#allocation3], 0
    %s17 = scalar_lea.sflag [#allocation3], 1
    %18 = vsyncpa %s17, 0
    %19 = vsyncpa [#allocation6], 0
    %20 = vsyncpa [#allocation9], 0
    %21 = vsyncpa [#allocation12], 0
    %22 = vsyncpa [#allocation4], 0
    %s23 = scalar_lea.sflag [#allocation4], 1
    %24 = vsyncpa %s23, 0
    loop: start=0, step=1, limit=4
    $region2: #{tpu_custom_call.1} parent=1 // loop_pre_header
      _
    $region3: #{tpu_custom_call.1} parent=1 // loop_header
      %s26 = sphi 0, %s30
      %p27 = scmp.ge.s32.totalorder %s26, 4
      %s33 = sphi 0, %s52
      %s34 = sphi 0, %s48
      %s35 = sphi 0, %s44
      %s36 = sphi 0, %s33
      %s37 = sphi 0, %s34
      %s38 = sphi 0, %s35
      %s39 = sphi 0, %s36
      %s40 = sphi 0, %s37
      %s41 = sphi 0, %s38
      %s59 = sphi 0, %s61
      %s62 = sphi 0, %s59
      %s63 = sphi 0, %s62
      %s79 = sphi 0, %s63
      %s83 = sphi 0, %s83
      %s85 = sphi 0, %s83
      %s86 = sphi 0, %s85
      %s100 = sphi 0, %s86
      %s104 = sphi 0, %s104
      %s106 = sphi 0, %s104
      %s107 = sphi 0, %s106
      %s121 = sphi 0, %s107
      %s125 = sphi 0, %s125
      %s127 = sphi 0, %s125
      %s128 = sphi 0, %s127
      %s142 = sphi 0, %s128
      %s146 = sphi 0, %s146
      %s148 = sphi 0, %s146
      %s149 = sphi 0, %s148
      %s163 = sphi 0, %s149
      %s167 = sphi 0, %s167
      %s169 = sphi 0, %s167
      %s170 = sphi 0, %s169
      %s184 = sphi 0, %s170
      %s188 = sphi 0, %s188
      %s190 = sphi 0, %s188
      %s191 = sphi 0, %s190
      %s205 = sphi 0, %s191
      %s209 = sphi 0, %s209
      %s211 = sphi 0, %s209
      %s212 = sphi 0, %s211
      %s226 = sphi 0, %s212
      %s230 = sphi 0, %s230
      %s232 = sphi 0, %s230
      %s233 = sphi 0, %s232
      %s247 = sphi 0, %s233
      %s251 = sphi 0, %s251
      %s253 = sphi 0, %s251
      %s254 = sphi 0, %s253
      %s268 = sphi 0, %s254
      %s272 = sphi 0, %s272
      %s274 = sphi 0, %s272
      %s275 = sphi 0, %s274
      %s289 = sphi 0, %s275
      %s297 = sphi 0, %s299
      %s300 = sphi 0, %s297
      %s301 = sphi 0, %s300
      %s317 = sphi 0, %s301
    $region4: #{tpu_custom_call.1} parent=1 // loop_header_branch
      %29 = sbr.rel (%p27) target = $region8
    $region5: #{tpu_custom_call.1} parent=1 // loop_body
      %s31 = ssub.s32 %s26, 1
      %s32 = ssub.s32 %s26, 2
      %s42 = sadd.s32 1, %s35
      %p43 = scmp.ge.s32.totalorder %s42, 1
      %s44 = scalar_select %p43, 0, %s42
      %s45 = sadd.s32 1, %s34
      %s46 = scalar_select %p43, %s45, %s34
      %p47 = scmp.ge.s32.totalorder %s46, 2
      %s48 = scalar_select %p47, 0, %s46
      %s49 = sadd.s32 1, %s33
      %s50 = scalar_select %p47, %s49, %s33
      %p51 = scmp.ge.s32.totalorder %s50, 1
      %s52 = scalar_select %p51, 0, %s50
      %s53 = sadd.s32 %s33, %s35
      %s54 = sadd.s32 %s52, %s44
      %s55 = ssub.s32 %s34, %s48
      %s56 = ssub.s32 %s53, %s54
      %s57 = sor.u32 %s55, %s56
      %p58 = scmp.eq.s32.totalorder %s57, 0
      %s60 = sadd.s32 %s59, 1
      %s61 = scalar_select %p58, %s59, %s60
      %p64 = pneg %p58
      %p65 = scmp.eq.s32.totalorder %s26, 1
      %p66 = por %p64, %p65
      %p67 = scmp.ne.s32.totalorder %s59, %s62
      %p68 = scmp.eq.s32.totalorder %s26, 0
      %p69 = por %p67, %p68
      %p70 = scmp.ne.s32.totalorder %s59, %s62
      %p71 = scmp.eq.s32.totalorder %s31, 1
      %p72 = por %p70, %p71
      %p73 = scmp.ne.s32.totalorder %s62, %s63
      %p74 = scmp.eq.s32.totalorder %s31, 0
      %p75 = por %p73, %p74
      %p76 = scmp.ne.s32.totalorder %s62, %s63
      %p77 = scmp.eq.s32.totalorder %s32, 1
      %p78 = por %p76, %p77
      %p80 = scmp.ne.s32.totalorder %s63, %s79
      %p81 = scmp.eq.s32.totalorder %s32, 0
      %p82 = por %p80, %p81
      %s84 = sadd.s32 %s83, 1
      %p87 = scmp.eq.s32.totalorder %s26, 1
      %p88 = scmp.ne.s32.totalorder %s83, %s85
      %p89 = scmp.eq.s32.totalorder %s26, 0
      %p90 = por %p88, %p89
      %p91 = scmp.ne.s32.totalorder %s83, %s85
      %p92 = scmp.eq.s32.totalorder %s31, 1
      %p93 = por %p91, %p92
      %p94 = scmp.ne.s32.totalorder %s85, %s86
      %p95 = scmp.eq.s32.totalorder %s31, 0
      %p96 = por %p94, %p95
      %p97 = scmp.ne.s32.totalorder %s85, %s86
      %p98 = scmp.eq.s32.totalorder %s32, 1
      %p99 = por %p97, %p98
      %p101 = scmp.ne.s32.totalorder %s86, %s100
      %p102 = scmp.eq.s32.totalorder %s32, 0
      %p103 = por %p101, %p102
      %s105 = sadd.s32 %s104, 1
      %p108 = scmp.eq.s32.totalorder %s26, 1
      %p109 = scmp.ne.s32.totalorder %s104, %s106
      %p110 = scmp.eq.s32.totalorder %s26, 0
      %p111 = por %p109, %p110
      %p112 = scmp.ne.s32.totalorder %s104, %s106
      %p113 = scmp.eq.s32.totalorder %s31, 1
      %p114 = por %p112, %p113
      %p115 = scmp.ne.s32.totalorder %s106, %s107
      %p116 = scmp.eq.s32.totalorder %s31, 0
      %p117 = por %p115, %p116
      %p118 = scmp.ne.s32.totalorder %s106, %s107
      %p119 = scmp.eq.s32.totalorder %s32, 1
      %p120 = por %p118, %p119
      %p122 = scmp.ne.s32.totalorder %s107, %s121
      %p123 = scmp.eq.s32.totalorder %s32, 0
      %p124 = por %p122, %p123
      %s126 = sadd.s32 %s125, 1
      %p129 = scmp.eq.s32.totalorder %s26, 1
      %p130 = scmp.ne.s32.totalorder %s125, %s127
      %p131 = scmp.eq.s32.totalorder %s26, 0
      %p132 = por %p130, %p131
      %p133 = scmp.ne.s32.totalorder %s125, %s127
      %p134 = scmp.eq.s32.totalorder %s31, 1
      %p135 = por %p133, %p134
      %p136 = scmp.ne.s32.totalorder %s127, %s128
      %p137 = scmp.eq.s32.totalorder %s31, 0
      %p138 = por %p136, %p137
      %p139 = scmp.ne.s32.totalorder %s127, %s128
      %p140 = scmp.eq.s32.totalorder %s32, 1
      %p141 = por %p139, %p140
      %p143 = scmp.ne.s32.totalorder %s128, %s142
      %p144 = scmp.eq.s32.totalorder %s32, 0
      %p145 = por %p143, %p144
      %s147 = sadd.s32 %s146, 1
      %p150 = scmp.eq.s32.totalorder %s26, 1
      %p151 = scmp.ne.s32.totalorder %s146, %s148
      %p152 = scmp.eq.s32.totalorder %s26, 0
      %p153 = por %p151, %p152
      %p154 = scmp.ne.s32.totalorder %s146, %s148
      %p155 = scmp.eq.s32.totalorder %s31, 1
      %p156 = por %p154, %p155
      %p157 = scmp.ne.s32.totalorder %s148, %s149
      %p158 = scmp.eq.s32.totalorder %s31, 0
      %p159 = por %p157, %p158
      %p160 = scmp.ne.s32.totalorder %s148, %s149
      %p161 = scmp.eq.s32.totalorder %s32, 1
      %p162 = por %p160, %p161
      %p164 = scmp.ne.s32.totalorder %s149, %s163
      %p165 = scmp.eq.s32.totalorder %s32, 0
      %p166 = por %p164, %p165
      %s168 = sadd.s32 %s167, 1
      %p171 = scmp.eq.s32.totalorder %s26, 1
      %p172 = scmp.ne.s32.totalorder %s167, %s169
      %p173 = scmp.eq.s32.totalorder %s26, 0
      %p174 = por %p172, %p173
      %p175 = scmp.ne.s32.totalorder %s167, %s169
      %p176 = scmp.eq.s32.totalorder %s31, 1
      %p177 = por %p175, %p176
      %p178 = scmp.ne.s32.totalorder %s169, %s170
      %p179 = scmp.eq.s32.totalorder %s31, 0
      %p180 = por %p178, %p179
      %p181 = scmp.ne.s32.totalorder %s169, %s170
      %p182 = scmp.eq.s32.totalorder %s32, 1
      %p183 = por %p181, %p182
      %p185 = scmp.ne.s32.totalorder %s170, %s184
      %p186 = scmp.eq.s32.totalorder %s32, 0
      %p187 = por %p185, %p186
      %s189 = sadd.s32 %s188, 1
      %p192 = scmp.eq.s32.totalorder %s26, 1
      %p193 = scmp.ne.s32.totalorder %s188, %s190
      %p194 = scmp.eq.s32.totalorder %s26, 0
      %p195 = por %p193, %p194
      %p196 = scmp.ne.s32.totalorder %s188, %s190
      %p197 = scmp.eq.s32.totalorder %s31, 1
      %p198 = por %p196, %p197
      %p199 = scmp.ne.s32.totalorder %s190, %s191
      %p200 = scmp.eq.s32.totalorder %s31, 0
      %p201 = por %p199, %p200
      %p202 = scmp.ne.s32.totalorder %s190, %s191
      %p203 = scmp.eq.s32.totalorder %s32, 1
      %p204 = por %p202, %p203
      %p206 = scmp.ne.s32.totalorder %s191, %s205
      %p207 = scmp.eq.s32.totalorder %s32, 0
      %p208 = por %p206, %p207
      %s210 = sadd.s32 %s209, 1
      %p213 = scmp.eq.s32.totalorder %s26, 1
      %p214 = scmp.ne.s32.totalorder %s209, %s211
      %p215 = scmp.eq.s32.totalorder %s26, 0
      %p216 = por %p214, %p215
      %p217 = scmp.ne.s32.totalorder %s209, %s211
      %p218 = scmp.eq.s32.totalorder %s31, 1
      %p219 = por %p217, %p218
      %p220 = scmp.ne.s32.totalorder %s211, %s212
      %p221 = scmp.eq.s32.totalorder %s31, 0
      %p222 = por %p220, %p221
      %p223 = scmp.ne.s32.totalorder %s211, %s212
      %p224 = scmp.eq.s32.totalorder %s32, 1
      %p225 = por %p223, %p224
      %p227 = scmp.ne.s32.totalorder %s212, %s226
      %p228 = scmp.eq.s32.totalorder %s32, 0
      %p229 = por %p227, %p228
      %s231 = sadd.s32 %s230, 1
      %p234 = scmp.eq.s32.totalorder %s26, 1
      %p235 = scmp.ne.s32.totalorder %s230, %s232
      %p236 = scmp.eq.s32.totalorder %s26, 0
      %p237 = por %p235, %p236
      %p238 = scmp.ne.s32.totalorder %s230, %s232
      %p239 = scmp.eq.s32.totalorder %s31, 1
      %p240 = por %p238, %p239
      %p241 = scmp.ne.s32.totalorder %s232, %s233
      %p242 = scmp.eq.s32.totalorder %s31, 0
      %p243 = por %p241, %p242
      %p244 = scmp.ne.s32.totalorder %s232, %s233
      %p245 = scmp.eq.s32.totalorder %s32, 1
      %p246 = por %p244, %p245
      %p248 = scmp.ne.s32.totalorder %s233, %s247
      %p249 = scmp.eq.s32.totalorder %s32, 0
      %p250 = por %p248, %p249
      %s252 = sadd.s32 %s251, 1
      %p255 = scmp.eq.s32.totalorder %s26, 1
      %p256 = scmp.ne.s32.totalorder %s251, %s253
      %p257 = scmp.eq.s32.totalorder %s26, 0
      %p258 = por %p256, %p257
      %p259 = scmp.ne.s32.totalorder %s251, %s253
      %p260 = scmp.eq.s32.totalorder %s31, 1
      %p261 = por %p259, %p260
      %p262 = scmp.ne.s32.totalorder %s253, %s254
      %p263 = scmp.eq.s32.totalorder %s31, 0
      %p264 = por %p262, %p263
      %p265 = scmp.ne.s32.totalorder %s253, %s254
      %p266 = scmp.eq.s32.totalorder %s32, 1
      %p267 = por %p265, %p266
      %p269 = scmp.ne.s32.totalorder %s254, %s268
      %p270 = scmp.eq.s32.totalorder %s32, 0
      %p271 = por %p269, %p270
      %s273 = sadd.s32 %s272, 1
      %p276 = scmp.eq.s32.totalorder %s26, 1
      %p277 = scmp.ne.s32.totalorder %s272, %s274
      %p278 = scmp.eq.s32.totalorder %s26, 0
      %p279 = por %p277, %p278
      %p280 = scmp.ne.s32.totalorder %s272, %s274
      %p281 = scmp.eq.s32.totalorder %s31, 1
      %p282 = por %p280, %p281
      %p283 = scmp.ne.s32.totalorder %s274, %s275
      %p284 = scmp.eq.s32.totalorder %s31, 0
      %p285 = por %p283, %p284
      %p286 = scmp.ne.s32.totalorder %s274, %s275
      %p287 = scmp.eq.s32.totalorder %s32, 1
      %p288 = por %p286, %p287
      %p290 = scmp.ne.s32.totalorder %s275, %s289
      %p291 = scmp.eq.s32.totalorder %s32, 0
      %p292 = por %p290, %p291
      %s293 = ssub.s32 %s33, %s52
      %s294 = ssub.s32 %s34, %s48
      %s295 = sor.u32 %s293, %s294
      %p296 = scmp.eq.s32.totalorder %s295, 0
      %s298 = sadd.s32 %s297, 1
      %s299 = scalar_select %p296, %s297, %s298
      %p302 = pneg %p296
      %p303 = scmp.eq.s32.totalorder %s26, 1
      %p304 = por %p302, %p303
      %p305 = scmp.ne.s32.totalorder %s297, %s300
      %p306 = scmp.eq.s32.totalorder %s26, 0
      %p307 = por %p305, %p306
      %p308 = scmp.ne.s32.totalorder %s297, %s300
      %p309 = scmp.eq.s32.totalorder %s31, 1
      %p310 = por %p308, %p309
      %p311 = scmp.ne.s32.totalorder %s300, %s301
      %p312 = scmp.eq.s32.totalorder %s31, 0
      %p313 = por %p311, %p312
      %p314 = scmp.ne.s32.totalorder %s300, %s301
      %p315 = scmp.eq.s32.totalorder %s32, 1
      %p316 = por %p314, %p315
      %p318 = scmp.ne.s32.totalorder %s301, %s317
      %p319 = scmp.eq.s32.totalorder %s32, 0
      %p320 = por %p318, %p319
      %p321 = scmp.le.s32.totalorder 1, %s26
      %p322 = scmp.lt.s32.totalorder %s26, 3
      %p323 = pnand %p321, %p322
      %p324 = pneg %p323
      // Predicated region
      $region9: #{tpu_custom_call.1} parent=5 // pred_check
        _
      $region10: #{tpu_custom_call.1} parent=5 // pred_check_branch
        %326 = sbr.rel (%p323) target = $region12
      $region11: #{tpu_custom_call.1} parent=5 // pred_region
        %s327 = ssub.s32 %s26, 1
        // Predicated region
        $region13: #{tpu_custom_call.1} parent=11 // pred_check
          %p328 = pneg %p96
        $region14: #{tpu_custom_call.1} parent=11 // pred_check_branch
          %330 = sbr.rel (%p328) target = $region16
        $region15: #{tpu_custom_call.1} parent=11 // pred_region
          %s332 = ssub.s32 64, 64
          %333 = vsyncadd [#allocation6], %s332
          %s335 = sshll.u32 [#allocation5], 4
          %s336 = int_to_ptr.vmem [resolvable:$true] %s335
          %338 = dma.hbm_to_vmem [thread:$0]  %s1, 64, %s336, [#allocation6]
        $region16: #{tpu_custom_call.1} parent=11 // pred_fallthru
          _
        // Predicated region
        $region17: #{tpu_custom_call.1} parent=11 // pred_check
          %p339 = pneg %p117
        $region18: #{tpu_custom_call.1} parent=11 // pred_check_branch
          %341 = sbr.rel (%p339) target = $region20
        $region19: #{tpu_custom_call.1} parent=11 // pred_region
          _
        $region20: #{tpu_custom_call.1} parent=11 // pred_fallthru
          _
        // Predicated region
        $region21: #{tpu_custom_call.1} parent=11 // pred_check
          %p342 = pneg %p138
        $region22: #{tpu_custom_call.1} parent=11 // pred_check_branch
          %344 = sbr.rel (%p342) target = $region24
        $region23: #{tpu_custom_call.1} parent=11 // pred_region
          %s346 = ssub.s32 512, 512
          %347 = vsyncadd [#allocation6], %s346
          %s348 = sshll.u32 [#allocation7], 4
          %s349 = int_to_ptr.vmem [resolvable:$true] %s348
          %354 = dma.hbm_to_vmem [thread:$0]  %s3, 512, %s349, [#allocation6], 64, 64, 4
        $region24: #{tpu_custom_call.1} parent=11 // pred_fallthru
          _
        // Predicated region
        $region25: #{tpu_custom_call.1} parent=11 // pred_check
          %p355 = pneg %p159
        $region26: #{tpu_custom_call.1} parent=11 // pred_check_branch
          %357 = sbr.rel (%p355) target = $region28
        $region27: #{tpu_custom_call.1} parent=11 // pred_region
          _
        $region28: #{tpu_custom_call.1} parent=11 // pred_fallthru
          _
        // Predicated region
        $region29: #{tpu_custom_call.1} parent=11 // pred_check
          %p358 = pneg %p180
        $region30: #{tpu_custom_call.1} parent=11 // pred_check_branch
          %360 = sbr.rel (%p358) target = $region32
        $region31: #{tpu_custom_call.1} parent=11 // pred_region
          %s362 = ssub.s32 512, 512
          %363 = vsyncadd [#allocation9], %s362
          %s364 = sshll.u32 [#allocation8], 4
          %s365 = int_to_ptr.vmem [resolvable:$true] %s364
          %370 = dma.hbm_to_vmem [thread:$0]  %s5, 512, %s365, [#allocation9], 64, 64, 4
        $region32: #{tpu_custom_call.1} parent=11 // pred_fallthru
          _
        // Predicated region
        $region33: #{tpu_custom_call.1} parent=11 // pred_check
          %p371 = pneg %p201
        $region34: #{tpu_custom_call.1} parent=11 // pred_check_branch
          %373 = sbr.rel (%p371) target = $region36
        $region35: #{tpu_custom_call.1} parent=11 // pred_region
          _
        $region36: #{tpu_custom_call.1} parent=11 // pred_fallthru
          _
        // Predicated region
        $region37: #{tpu_custom_call.1} parent=11 // pred_check
          %p374 = pneg %p222
        $region38: #{tpu_custom_call.1} parent=11 // pred_check_branch
          %376 = sbr.rel (%p374) target = $region40
        $region39: #{tpu_custom_call.1} parent=11 // pred_region
          %s378 = ssub.s32 512, 512
          %379 = vsyncadd [#allocation9], %s378
          %s380 = sshll.u32 [#allocation10], 4
          %s381 = int_to_ptr.vmem [resolvable:$true] %s380
          %386 = dma.hbm_to_vmem [thread:$0]  %s7, 512, %s381, [#allocation9], 64, 64, 4
        $region40: #{tpu_custom_call.1} parent=11 // pred_fallthru
          _
        // Predicated region
        $region41: #{tpu_custom_call.1} parent=11 // pred_check
          %p387 = pneg %p243
        $region42: #{tpu_custom_call.1} parent=11 // pred_check_branch
          %389 = sbr.rel (%p387) target = $region44
        $region43: #{tpu_custom_call.1} parent=11 // pred_region
          _
        $region44: #{tpu_custom_call.1} parent=11 // pred_fallthru
          _
        // Predicated region
        $region45: #{tpu_custom_call.1} parent=11 // pred_check
          %p390 = pneg %p264
        $region46: #{tpu_custom_call.1} parent=11 // pred_check_branch
          %392 = sbr.rel (%p390) target = $region48
        $region47: #{tpu_custom_call.1} parent=11 // pred_region
          %s394 = ssub.s32 8192, 8192
          %395 = vsyncadd [#allocation12], %s394
          %s396 = sshll.u32 [#allocation11], 4
          %s397 = int_to_ptr.vmem [resolvable:$true] %s396
          %402 = dma.hbm_to_vmem [thread:$0]  %s9, 8192, %s397, [#allocation12], 512, 512, 32
        $region48: #{tpu_custom_call.1} parent=11 // pred_fallthru
          _
        // Predicated region
        $region49: #{tpu_custom_call.1} parent=11 // pred_check
          %p403 = pneg %p285
        $region50: #{tpu_custom_call.1} parent=11 // pred_check_branch
          %405 = sbr.rel (%p403) target = $region52
        $region51: #{tpu_custom_call.1} parent=11 // pred_region
          _
        $region52: #{tpu_custom_call.1} parent=11 // pred_fallthru
          _
      $region12: #{tpu_custom_call.1} parent=5 // pred_fallthru
        _
      %p406 = scmp.lt.s32.totalorder %s26, 2
      // Predicated region
      $region53: #{tpu_custom_call.1} parent=5 // pred_check
        %p407 = pneg %p406
      $region54: #{tpu_custom_call.1} parent=5 // pred_check_branch
        %409 = sbr.rel (%p407) target = $region56
      $region55: #{tpu_custom_call.1} parent=5 // pred_region
        // Predicated region
        $region57: #{tpu_custom_call.1} parent=55 // pred_check
          %p410 = pneg %p69
        $region58: #{tpu_custom_call.1} parent=55 // pred_check_branch
          %412 = sbr.rel (%p410) target = $region60
        $region59: #{tpu_custom_call.1} parent=55 // pred_region
          %s413 = sand.u32 %s59, 1
          %s414 = scalar_lea.sflag [#allocation3], %s413
          %s415 = sand.u32 %s59, 1
          %s416 = smul.addr %s415, 8
          %s417 = scalar_lea.vmem [#allocation2], %s416
          %s418 = sadd.s32 %s33, %s35
          %s420 = ssub.s32 128, 128
          %421 = vsyncadd %s414, %s420
          %s422 = sadd.s32 %s418, %s34
          %s423 = smul.addr %s422, 128
          %s424 = scalar_lea.hbm %s0, %s423
          %s426 = sshll.u32 %s417, 4
          %s427 = int_to_ptr.vmem [resolvable:$true] %s426
          %429 = dma.hbm_to_vmem [thread:$0]  %s424, 128, %s427, %s414
        $region60: #{tpu_custom_call.1} parent=55 // pred_fallthru
          _
      $region56: #{tpu_custom_call.1} parent=5 // pred_fallthru
        _
      %p430 = scmp.le.s32.totalorder 1, %s26
      %p431 = scmp.lt.s32.totalorder %s26, 3
      %p432 = pnand %p430, %p431
      %p433 = pneg %p432
      // Predicated region
      $region61: #{tpu_custom_call.1} parent=5 // pred_check
        _
      $region62: #{tpu_custom_call.1} parent=5 // pred_check_branch
        %435 = sbr.rel (%p432) target = $region64
      $region63: #{tpu_custom_call.1} parent=5 // pred_region
        %s436 = ssub.s32 %s26, 1
        %s437 = sand.u32 %s62, 1
        %s438 = scalar_lea.sflag [#allocation3], %s437
        %s439 = sand.u32 %s62, 1
        %s440 = smul.addr %s439, 8
        %s441 = scalar_lea.vmem [#allocation2], %s440
        // Predicated region
        $region65: #{tpu_custom_call.1} parent=63 // pred_check
          %p442 = pneg %p75
        $region66: #{tpu_custom_call.1} parent=63 // pred_check_branch
          %444 = sbr.rel (%p442) target = $region68
        $region67: #{tpu_custom_call.1} parent=63 // pred_region
          %445 = dma.done %s438, 128
        $region68: #{tpu_custom_call.1} parent=63 // pred_fallthru
          _
        // Predicated region
        $region69: #{tpu_custom_call.1} parent=63 // pred_check
          %p446 = pneg %p96
        $region70: #{tpu_custom_call.1} parent=63 // pred_check_branch
          %448 = sbr.rel (%p446) target = $region72
        $region71: #{tpu_custom_call.1} parent=63 // pred_region
          %449 = dma.done [#allocation6], 64
        $region72: #{tpu_custom_call.1} parent=63 // pred_fallthru
          _
        // Predicated region
        $region73: #{tpu_custom_call.1} parent=63 // pred_check
          %p450 = pneg %p138
        $region74: #{tpu_custom_call.1} parent=63 // pred_check_branch
          %452 = sbr.rel (%p450) target = $region76
        $region75: #{tpu_custom_call.1} parent=63 // pred_region
          %453 = dma.done [#allocation6], 512
        $region76: #{tpu_custom_call.1} parent=63 // pred_fallthru
          _
        // Predicated region
        $region77: #{tpu_custom_call.1} parent=63 // pred_check
          %p454 = pneg %p180
        $region78: #{tpu_custom_call.1} parent=63 // pred_check_branch
          %456 = sbr.rel (%p454) target = $region80
        $region79: #{tpu_custom_call.1} parent=63 // pred_region
          %457 = dma.done [#allocation9], 512
        $region80: #{tpu_custom_call.1} parent=63 // pred_fallthru
          _
        // Predicated region
        $region81: #{tpu_custom_call.1} parent=63 // pred_check
          %p458 = pneg %p222
        $region82: #{tpu_custom_call.1} parent=63 // pred_check_branch
          %460 = sbr.rel (%p458) target = $region84
        $region83: #{tpu_custom_call.1} parent=63 // pred_region
          %461 = dma.done [#allocation9], 512
        $region84: #{tpu_custom_call.1} parent=63 // pred_fallthru
          _
        // Predicated region
        $region85: #{tpu_custom_call.1} parent=63 // pred_check
          %p462 = pneg %p264
        $region86: #{tpu_custom_call.1} parent=63 // pred_check_branch
          %464 = sbr.rel (%p462) target = $region88
        $region87: #{tpu_custom_call.1} parent=63 // pred_region
          %465 = dma.done [#allocation12], 8192
        $region88: #{tpu_custom_call.1} parent=63 // pred_fallthru
          _
        %s466 = sand.u32 %s62, 1
        %s467 = scalar_lea.sflag [#allocation3], %s466
        %s468 = sand.u32 %s62, 1
        %s469 = smul.addr %s468, 8
        %s470 = scalar_lea.vmem [#allocation2], %s469
        %p471 = pneg %p75
        %p472 = pneg %p72
        %p473 = pneg %p96
        %p474 = pneg %p93
        %p475 = pneg %p117
        %p476 = pneg %p114
        %p477 = pneg %p138
        %p478 = pneg %p135
        %p479 = pneg %p159
        %p480 = pneg %p156
        %p481 = pneg %p180
        %p482 = pneg %p177
        %p483 = pneg %p201
        %p484 = pneg %p198
        %p485 = pneg %p222
        %p486 = pneg %p219
        %p487 = pneg %p243
        %p488 = pneg %p240
        %p489 = pneg %p264
        %p490 = pneg %p261
        %p491 = pneg %p285
        %p492 = pneg %p282
        %p493 = pneg %p313
        %p494 = pneg %p310
        %s495 = sand.u32 %s300, 1
        %s496 = scalar_lea.sflag [#allocation4], %s495
        %s497 = sand.u32 %s300, 1
        %s498 = smul.addr %s497, 8
        %s499 = scalar_lea.vmem [#allocation13], %s498
        %s500 = sadd.s32 %s36, %s38
        %v502 = vld [vmem:[%s441] sm:$0xff]
        %v503 = vld [vmem:[#allocation5] sm:$0xf]
        %v504 = vld [vmem:[%s2] sm:$0x1]
        %v505 = vpack.c.bf16 %v502, %v502
        %v507 = vlaneseq
        %v508 = vshrl.u32 %v507, 7
        %v509 = vsub.s32 0, %v508
        %v510 = vrot.slane %v504, %v509
        %vm512 = vcmask 64512
        %v514 = vsel %vm512, %v505, 0
        %vm516 = vcmask 1043456
        %v518 = vsel %vm516, %v503, 0
        %520 = vmatprep.subr.bf16.mxu0 0
        %521 = vmatpush1.bf16.msra.mxu0 0
        %522 = vmatprep.subr.bf16.mxu0 0
        %523 = vmatpush1.bf16.msra.mxu0 0
        %524 = vmatprep.subr.bf16.mxu0 0
        %525 = vmatpush1.bf16.msra.mxu0 0
        %526 = vmatprep.subr.bf16.mxu0 0
        %527 = vmatpush1.bf16.msra.mxu0 0
        %528 = vmatprep.subr.bf16.mxu0 0
        %529 = vmatpush1.bf16.msra.mxu0 0
        %530 = vmatprep.subr.bf16.mxu0 0
        %531 = vmatpush1.bf16.msra.mxu0 0
        %532 = vmatprep.subr.bf16.mxu0 0
        %533 = vmatpush1.bf16.msra.mxu0 0
        %534 = vmatprep.subr.bf16.mxu0 0
        %535 = vmatpush1.bf16.msra.mxu0 %v518
        %536 = vmatprep.subr.bf16.mxu0 0
        %537 = vmatpush2.bf16.msra.mxu0 0
        %538 = vmatprep.subr.bf16.mxu0 0
        %539 = vmatpush2.bf16.msra.mxu0 0
        %540 = vmatprep.subr.bf16.mxu0 0
        %541 = vmatpush2.bf16.msra.mxu0 0
        %542 = vmatprep.subr.bf16.mxu0 0
        %543 = vmatpush2.bf16.msra.mxu0 0
        %544 = vmatprep.subr.bf16.mxu0 0
        %545 = vmatpush2.bf16.msra.mxu0 0
        %546 = vmatprep.subr.bf16.mxu0 0
        %547 = vmatpush2.bf16.msra.mxu0 0
        %548 = vmatprep.subr.bf16.mxu0 0
        %549 = vmatpush2.bf16.msra.mxu0 0
        %550 = vmatprep.subr.bf16.mxu0 0
        %551 = vmatpush2.bf16.msra.mxu0 0
        %552 = vmatprep.mubr.bf16.mxu0 0
        %553 = vmatmul.mubr.bf16.gmra.mxu0 %v514
        %v554 = vpop.f32.mrf.mxu0
        %v555 = vadd.f32 %v510, %v554
        %v556 = vpop.f32.mrf.mxu0
        %v557 = vpop.f32.mrf.mxu0
        %v558 = vpop.f32.mrf.mxu0
        %559 = vdwg.mxu0
        %v560 = vmax.f32 %v555, 0.0
        %v561 = vld [vmem:[#allocation7] sm:$0xf]
        %v562 = vld [vmem:[#allocation7 + $0x4] sm:$0xf]
        %v563 = vld [vmem:[#allocation7 + $0x8] sm:$0xf]
        %v564 = vld [vmem:[#allocation7 + $0xc] sm:$0xf]
        %v565 = vld [vmem:[#allocation7 + $0x10] sm:$0xf]
        %v566 = vld [vmem:[#allocation7 + $0x14] sm:$0xf]
        %v567 = vld [vmem:[#allocation7 + $0x18] sm:$0xf]
        %v568 = vld [vmem:[#allocation7 + $0x1c] sm:$0xf]
        %v569 = vld [vmem:[%s4] sm:$0x1]
        %v570 = vpack.c.bf16 %v560, %v560
        %v572 = vlaneseq
        %v573 = vshrl.u32 %v572, 7
        %v574 = vsub.s32 0, %v573
        %v575 = vrot.slane %v569, %v574
        %v585 = vunpack.c.l.b16 %v561
        %v586 = vunpack.c.l.b16 %v562
        %v587 = vunpack.c.l.b16 %v563
        %v588 = vunpack.c.l.b16 %v564
        %v589 = vunpack.c.l.b16 %v565
        %v590 = vunpack.c.l.b16 %v566
        %v591 = vunpack.c.l.b16 %v567
        %v592 = vunpack.c.l.b16 %v568
        %v593 = vpack.c.b16 %v586, %v585
        %v594 = vpack.c.b16 %v588, %v587
        %v595 = vpack.c.b16 %v590, %v589
        %v596 = vpack.c.b16 %v592, %v591
        %vm601 = vcmask 523264
        %v603 = vsel %vm601, %v570, 0
        %605 = vmatprep.subr.bf16.mxu0 0
        %606 = vmatpush1.bf16.msra.mxu0 0
        %607 = vmatprep.subr.bf16.mxu0 0
        %608 = vmatpush1.bf16.msra.mxu0 0
        %609 = vmatprep.subr.bf16.mxu0 0
        %610 = vmatpush1.bf16.msra.mxu0 0
        %611 = vmatprep.subr.bf16.mxu0 0
        %612 = vmatpush1.bf16.msra.mxu0 0
        %613 = vmatprep.subr.bf16.mxu0 0
        %614 = vmatpush1.bf16.msra.mxu0 %v596
        %615 = vmatprep.subr.bf16.mxu0 0
        %616 = vmatpush1.bf16.msra.mxu0 %v595
        %617 = vmatprep.subr.bf16.mxu0 0
        %618 = vmatpush1.bf16.msra.mxu0 %v594
        %619 = vmatprep.subr.bf16.mxu0 0
        %620 = vmatpush1.bf16.msra.mxu0 %v593
        %621 = vmatprep.subr.bf16.mxu0 0
        %622 = vmatpush2.bf16.msra.mxu0 0
        %623 = vmatprep.subr.bf16.mxu0 0
        %624 = vmatpush2.bf16.msra.mxu0 0
        %625 = vmatprep.subr.bf16.mxu0 0
        %626 = vmatpush2.bf16.msra.mxu0 0
        %627 = vmatprep.subr.bf16.mxu0 0
        %628 = vmatpush2.bf16.msra.mxu0 0
        %629 = vmatprep.subr.bf16.mxu0 0
        %630 = vmatpush2.bf16.msra.mxu0 0
        %631 = vmatprep.subr.bf16.mxu0 0
        %632 = vmatpush2.bf16.msra.mxu0 0
        %633 = vmatprep.subr.bf16.mxu0 0
        %634 = vmatpush2.bf16.msra.mxu0 0
        %635 = vmatprep.subr.bf16.mxu0 0
        %636 = vmatpush2.bf16.msra.mxu0 0
        %637 = vmatprep.mubr.bf16.mxu0 0
        %638 = vmatmul.mubr.bf16.gmra.mxu0 %v603
        %v639 = vpop.f32.mrf.mxu0
        %v640 = vadd.f32 %v575, %v639
        %v641 = vpop.f32.mrf.mxu0
        %v642 = vpop.f32.mrf.mxu0
        %v643 = vpop.f32.mrf.mxu0
        %644 = vdwg.mxu0
        %v645 = vmax.f32 %v640, 0.0
        %v646 = vld [vmem:[#allocation8] sm:$0xf]
        %v647 = vld [vmem:[#allocation8 + $0x4] sm:$0xf]
        %v648 = vld [vmem:[#allocation8 + $0x8] sm:$0xf]
        %v649 = vld [vmem:[#allocation8 + $0xc] sm:$0xf]
        %v650 = vld [vmem:[#allocation8 + $0x10] sm:$0xf]
        %v651 = vld [vmem:[#allocation8 + $0x14] sm:$0xf]
        %v652 = vld [vmem:[#allocation8 + $0x18] sm:$0xf]
        %v653 = vld [vmem:[#allocation8 + $0x1c] sm:$0xf]
        %v654 = vld [vmem:[%s6] sm:$0x1]
        %v655 = vpack.c.bf16 %v645, %v645
        %v657 = vlaneseq
        %v658 = vshrl.u32 %v657, 7
        %v659 = vsub.s32 0, %v658
        %v660 = vrot.slane %v654, %v659
        %v670 = vunpack.c.l.b16 %v646
        %v671 = vunpack.c.l.b16 %v647
        %v672 = vunpack.c.l.b16 %v648
        %v673 = vunpack.c.l.b16 %v649
        %v674 = vunpack.c.l.b16 %v650
        %v675 = vunpack.c.l.b16 %v651
        %v676 = vunpack.c.l.b16 %v652
        %v677 = vunpack.c.l.b16 %v653
        %v678 = vpack.c.b16 %v671, %v670
        %v679 = vpack.c.b16 %v673, %v672
        %v680 = vpack.c.b16 %v675, %v674
        %v681 = vpack.c.b16 %v677, %v676
        %v687 = vsel %vm601, %v655, 0
        %689 = vmatprep.subr.bf16.mxu0 0
        %690 = vmatpush1.bf16.msra.mxu0 0
        %691 = vmatprep.subr.bf16.mxu0 0
        %692 = vmatpush1.bf16.msra.mxu0 0
        %693 = vmatprep.subr.bf16.mxu0 0
        %694 = vmatpush1.bf16.msra.mxu0 0
        %695 = vmatprep.subr.bf16.mxu0 0
        %696 = vmatpush1.bf16.msra.mxu0 0
        %697 = vmatprep.subr.bf16.mxu0 0
        %698 = vmatpush1.bf16.msra.mxu0 %v681
        %699 = vmatprep.subr.bf16.mxu0 0
        %700 = vmatpush1.bf16.msra.mxu0 %v680
        %701 = vmatprep.subr.bf16.mxu0 0
        %702 = vmatpush1.bf16.msra.mxu0 %v679
        %703 = vmatprep.subr.bf16.mxu0 0
        %704 = vmatpush1.bf16.msra.mxu0 %v678
        %705 = vmatprep.subr.bf16.mxu0 0
        %706 = vmatpush2.bf16.msra.mxu0 0
        %707 = vmatprep.subr.bf16.mxu0 0
        %708 = vmatpush2.bf16.msra.mxu0 0
        %709 = vmatprep.subr.bf16.mxu0 0
        %710 = vmatpush2.bf16.msra.mxu0 0
        %711 = vmatprep.subr.bf16.mxu0 0
        %712 = vmatpush2.bf16.msra.mxu0 0
        %713 = vmatprep.subr.bf16.mxu0 0
        %714 = vmatpush2.bf16.msra.mxu0 0
        %715 = vmatprep.subr.bf16.mxu0 0
        %716 = vmatpush2.bf16.msra.mxu0 0
        %717 = vmatprep.subr.bf16.mxu0 0
        %718 = vmatpush2.bf16.msra.mxu0 0
        %719 = vmatprep.subr.bf16.mxu0 0
        %720 = vmatpush2.bf16.msra.mxu0 0
        %721 = vmatprep.mubr.bf16.mxu0 0
        %722 = vmatmul.mubr.bf16.gmra.mxu0 %v687
        %v723 = vpop.f32.mrf.mxu0
        %v724 = vadd.f32 %v660, %v723
        %v725 = vpop.f32.mrf.mxu0
        %v726 = vpop.f32.mrf.mxu0
        %v727 = vpop.f32.mrf.mxu0
        %728 = vdwg.mxu0
        %v729 = vmax.f32 %v724, 0.0
        %v730 = vld [vmem:[#allocation10] sm:$0xf]
        %v731 = vld [vmem:[#allocation10 + $0x4] sm:$0xf]
        %v732 = vld [vmem:[#allocation10 + $0x8] sm:$0xf]
        %v733 = vld [vmem:[#allocation10 + $0xc] sm:$0xf]
        %v734 = vld [vmem:[#allocation10 + $0x10] sm:$0xf]
        %v735 = vld [vmem:[#allocation10 + $0x14] sm:$0xf]
        %v736 = vld [vmem:[#allocation10 + $0x18] sm:$0xf]
        %v737 = vld [vmem:[#allocation10 + $0x1c] sm:$0xf]
        %v738 = vld [vmem:[%s8] sm:$0x1]
        %v739 = vpack.c.bf16 %v729, %v729
        %v741 = vlaneseq
        %v742 = vshrl.u32 %v741, 7
        %v743 = vsub.s32 0, %v742
        %v744 = vrot.slane %v738, %v743
        %v754 = vunpack.c.l.b16 %v730
        %v755 = vunpack.c.l.b16 %v731
        %v756 = vunpack.c.l.b16 %v732
        %v757 = vunpack.c.l.b16 %v733
        %v758 = vunpack.c.l.b16 %v734
        %v759 = vunpack.c.l.b16 %v735
        %v760 = vunpack.c.l.b16 %v736
        %v761 = vunpack.c.l.b16 %v737
        %v762 = vpack.c.b16 %v755, %v754
        %v763 = vpack.c.b16 %v757, %v756
        %v764 = vpack.c.b16 %v759, %v758
        %v765 = vpack.c.b16 %v761, %v760
        %v771 = vsel %vm601, %v739, 0
        %773 = vmatprep.subr.bf16.mxu0 0
        %774 = vmatpush1.bf16.msra.mxu0 0
        %775 = vmatprep.subr.bf16.mxu0 0
        %776 = vmatpush1.bf16.msra.mxu0 0
        %777 = vmatprep.subr.bf16.mxu0 0
        %778 = vmatpush1.bf16.msra.mxu0 0
        %779 = vmatprep.subr.bf16.mxu0 0
        %780 = vmatpush1.bf16.msra.mxu0 0
        %781 = vmatprep.subr.bf16.mxu0 0
        %782 = vmatpush1.bf16.msra.mxu0 %v765
        %783 = vmatprep.subr.bf16.mxu0 0
        %784 = vmatpush1.bf16.msra.mxu0 %v764
        %785 = vmatprep.subr.bf16.mxu0 0
        %786 = vmatpush1.bf16.msra.mxu0 %v763
        %787 = vmatprep.subr.bf16.mxu0 0
        %788 = vmatpush1.bf16.msra.mxu0 %v762
        %789 = vmatprep.subr.bf16.mxu0 0
        %790 = vmatpush2.bf16.msra.mxu0 0
        %791 = vmatprep.subr.bf16.mxu0 0
        %792 = vmatpush2.bf16.msra.mxu0 0
        %793 = vmatprep.subr.bf16.mxu0 0
        %794 = vmatpush2.bf16.msra.mxu0 0
        %795 = vmatprep.subr.bf16.mxu0 0
        %796 = vmatpush2.bf16.msra.mxu0 0
        %797 = vmatprep.subr.bf16.mxu0 0
        %798 = vmatpush2.bf16.msra.mxu0 0
        %799 = vmatprep.subr.bf16.mxu0 0
        %800 = vmatpush2.bf16.msra.mxu0 0
        %801 = vmatprep.subr.bf16.mxu0 0
        %802 = vmatpush2.bf16.msra.mxu0 0
        %803 = vmatprep.subr.bf16.mxu0 0
        %804 = vmatpush2.bf16.msra.mxu0 0
        %805 = vmatprep.mubr.bf16.mxu0 0
        %806 = vmatmul.mubr.bf16.gmra.mxu0 %v771
        %v807 = vpop.f32.mrf.mxu0
        %v808 = vadd.f32 %v744, %v807
        %v809 = vpop.f32.mrf.mxu0
        %v810 = vpop.f32.mrf.mxu0
        %v811 = vpop.f32.mrf.mxu0
        %812 = vdwg.mxu0
        %v813 = vmax.f32 %v808, 0.0
        %v814 = vld [vmem:[#allocation11] sm:$0xff]
        %v815 = vld [vmem:[#allocation11 + $0x8] sm:$0xff]
        %v816 = vld [vmem:[#allocation11 + $0x10] sm:$0xff]
        %v817 = vld [vmem:[#allocation11 + $0x18] sm:$0xff]
        %v818 = vld [vmem:[#allocation11 + $0x20] sm:$0xff]
        %v819 = vld [vmem:[#allocation11 + $0x28] sm:$0xff]
        %v820 = vld [vmem:[#allocation11 + $0x30] sm:$0xff]
        %v821 = vld [vmem:[#allocation11 + $0x38] sm:$0xff]
        %v822 = vld [vmem:[#allocation11 + $0x40] sm:$0xff]
        %v823 = vld [vmem:[#allocation11 + $0x48] sm:$0xff]
        %v824 = vld [vmem:[#allocation11 + $0x50] sm:$0xff]
        %v825 = vld [vmem:[#allocation11 + $0x58] sm:$0xff]
        %v826 = vld [vmem:[#allocation11 + $0x60] sm:$0xff]
        %v827 = vld [vmem:[#allocation11 + $0x68] sm:$0xff]
        %v828 = vld [vmem:[#allocation11 + $0x70] sm:$0xff]
        %v829 = vld [vmem:[#allocation11 + $0x78] sm:$0xff]
        %v830 = vld [vmem:[#allocation11 + $0x80] sm:$0xff]
        %v831 = vld [vmem:[#allocation11 + $0x88] sm:$0xff]
        %v832 = vld [vmem:[#allocation11 + $0x90] sm:$0xff]
        %v833 = vld [vmem:[#allocation11 + $0x98] sm:$0xff]
        %v834 = vld [vmem:[#allocation11 + $0xa0] sm:$0xff]
        %v835 = vld [vmem:[#allocation11 + $0xa8] sm:$0xff]
        %v836 = vld [vmem:[#allocation11 + $0xb0] sm:$0xff]
        %v837 = vld [vmem:[#allocation11 + $0xb8] sm:$0xff]
        %v838 = vld [vmem:[#allocation11 + $0xc0] sm:$0xff]
        %v839 = vld [vmem:[#allocation11 + $0xc8] sm:$0xff]
        %v840 = vld [vmem:[#allocation11 + $0xd0] sm:$0xff]
        %v841 = vld [vmem:[#allocation11 + $0xd8] sm:$0xff]
        %v842 = vld [vmem:[#allocation11 + $0xe0] sm:$0xff]
        %v843 = vld [vmem:[#allocation11 + $0xe8] sm:$0xff]
        %v844 = vld [vmem:[#allocation11 + $0xf0] sm:$0xff]
        %v845 = vld [vmem:[#allocation11 + $0xf8] sm:$0xff]
        %v846 = vld [vmem:[#allocation11 + $0x100] sm:$0xff]
        %v847 = vld [vmem:[#allocation11 + $0x108] sm:$0xff]
        %v848 = vld [vmem:[#allocation11 + $0x110] sm:$0xff]
        %v849 = vld [vmem:[#allocation11 + $0x118] sm:$0xff]
        %v850 = vld [vmem:[#allocation11 + $0x120] sm:$0xff]
        %v851 = vld [vmem:[#allocation11 + $0x128] sm:$0xff]
        %v852 = vld [vmem:[#allocation11 + $0x130] sm:$0xff]
        %v853 = vld [vmem:[#allocation11 + $0x138] sm:$0xff]
        %v854 = vld [vmem:[#allocation11 + $0x140] sm:$0xff]
        %v855 = vld [vmem:[#allocation11 + $0x148] sm:$0xff]
        %v856 = vld [vmem:[#allocation11 + $0x150] sm:$0xff]
        %v857 = vld [vmem:[#allocation11 + $0x158] sm:$0xff]
        %v858 = vld [vmem:[#allocation11 + $0x160] sm:$0xff]
        %v859 = vld [vmem:[#allocation11 + $0x168] sm:$0xff]
        %v860 = vld [vmem:[#allocation11 + $0x170] sm:$0xff]
        %v861 = vld [vmem:[#allocation11 + $0x178] sm:$0xff]
        %v862 = vld [vmem:[#allocation11 + $0x180] sm:$0xff]
        %v863 = vld [vmem:[#allocation11 + $0x188] sm:$0xff]
        %v864 = vld [vmem:[#allocation11 + $0x190] sm:$0xff]
        %v865 = vld [vmem:[#allocation11 + $0x198] sm:$0xff]
        %v866 = vld [vmem:[#allocation11 + $0x1a0] sm:$0xff]
        %v867 = vld [vmem:[#allocation11 + $0x1a8] sm:$0xff]
        %v868 = vld [vmem:[#allocation11 + $0x1b0] sm:$0xff]
        %v869 = vld [vmem:[#allocation11 + $0x1b8] sm:$0xff]
        %v870 = vld [vmem:[#allocation11 + $0x1c0] sm:$0xff]
        %v871 = vld [vmem:[#allocation11 + $0x1c8] sm:$0xff]
        %v872 = vld [vmem:[#allocation11 + $0x1d0] sm:$0xff]
        %v873 = vld [vmem:[#allocation11 + $0x1d8] sm:$0xff]
        %v874 = vld [vmem:[#allocation11 + $0x1e0] sm:$0xff]
        %v875 = vld [vmem:[#allocation11 + $0x1e8] sm:$0xff]
        %v876 = vld [vmem:[#allocation11 + $0x1f0] sm:$0xff]
        %v877 = vld [vmem:[#allocation11 + $0x1f8] sm:$0xff]
        %v878 = vld [vmem:[%s10] sm:$0xff]
        %v879 = vpack.c.bf16 %v813, %v813
        %v881 = vlaneseq
        %v882 = vshrl.u32 %v881, 7
        %v883 = vsub.s32 0, %v882
        %v884 = vrot.slane %v878, %v883
        %v885 = vlaneseq
        %v886 = vshrl.u32 %v885, 7
        %v887 = vsub.s32 1, %v886
        %v888 = vrot.slane %v878, %v887
        %v889 = vlaneseq
        %v890 = vshrl.u32 %v889, 7
        %v891 = vsub.s32 2, %v890
        %v892 = vrot.slane %v878, %v891
        %v893 = vlaneseq
        %v894 = vshrl.u32 %v893, 7
        %v895 = vsub.s32 3, %v894
        %v896 = vrot.slane %v878, %v895
        %v897 = vlaneseq
        %v898 = vshrl.u32 %v897, 7
        %v899 = vsub.s32 4, %v898
        %v900 = vrot.slane %v878, %v899
        %v901 = vlaneseq
        %v902 = vshrl.u32 %v901, 7
        %v903 = vsub.s32 5, %v902
        %v904 = vrot.slane %v878, %v903
        %v905 = vlaneseq
        %v906 = vshrl.u32 %v905, 7
        %v907 = vsub.s32 6, %v906
        %v908 = vrot.slane %v878, %v907
        %v909 = vlaneseq
        %v910 = vshrl.u32 %v909, 7
        %v911 = vsub.s32 7, %v910
        %v912 = vrot.slane %v878, %v911
        %v985 = vunpack.c.l.b16 %v814
        %v986 = vunpack.c.h.b16 %v814
        %v987 = vunpack.c.l.b16 %v815
        %v988 = vunpack.c.h.b16 %v815
        %v989 = vunpack.c.l.b16 %v816
        %v990 = vunpack.c.h.b16 %v816
        %v991 = vunpack.c.l.b16 %v817
        %v992 = vunpack.c.h.b16 %v817
        %v993 = vunpack.c.l.b16 %v818
        %v994 = vunpack.c.h.b16 %v818
        %v995 = vunpack.c.l.b16 %v819
        %v996 = vunpack.c.h.b16 %v819
        %v997 = vunpack.c.l.b16 %v820
        %v998 = vunpack.c.h.b16 %v820
        %v999 = vunpack.c.l.b16 %v821
        %v1000 = vunpack.c.h.b16 %v821
        %v1001 = vunpack.c.l.b16 %v822
        %v1002 = vunpack.c.h.b16 %v822
        %v1003 = vunpack.c.l.b16 %v823
        %v1004 = vunpack.c.h.b16 %v823
        %v1005 = vunpack.c.l.b16 %v824
        %v1006 = vunpack.c.h.b16 %v824
        %v1007 = vunpack.c.l.b16 %v825
        %v1008 = vunpack.c.h.b16 %v825
        %v1009 = vunpack.c.l.b16 %v826
        %v1010 = vunpack.c.h.b16 %v826
        %v1011 = vunpack.c.l.b16 %v827
        %v1012 = vunpack.c.h.b16 %v827
        %v1013 = vunpack.c.l.b16 %v828
        %v1014 = vunpack.c.h.b16 %v828
        %v1015 = vunpack.c.l.b16 %v829
        %v1016 = vunpack.c.h.b16 %v829
        %v1017 = vunpack.c.l.b16 %v830
        %v1018 = vunpack.c.h.b16 %v830
        %v1019 = vunpack.c.l.b16 %v831
        %v1020 = vunpack.c.h.b16 %v831
        %v1021 = vunpack.c.l.b16 %v832
        %v1022 = vunpack.c.h.b16 %v832
        %v1023 = vunpack.c.l.b16 %v833
        %v1024 = vunpack.c.h.b16 %v833
        %v1025 = vunpack.c.l.b16 %v834
        %v1026 = vunpack.c.h.b16 %v834
        %v1027 = vunpack.c.l.b16 %v835
        %v1028 = vunpack.c.h.b16 %v835
        %v1029 = vunpack.c.l.b16 %v836
        %v1030 = vunpack.c.h.b16 %v836
        %v1031 = vunpack.c.l.b16 %v837
        %v1032 = vunpack.c.h.b16 %v837
        %v1033 = vunpack.c.l.b16 %v838
        %v1034 = vunpack.c.h.b16 %v838
        %v1035 = vunpack.c.l.b16 %v839
        %v1036 = vunpack.c.h.b16 %v839
        %v1037 = vunpack.c.l.b16 %v840
        %v1038 = vunpack.c.h.b16 %v840
        %v1039 = vunpack.c.l.b16 %v841
        %v1040 = vunpack.c.h.b16 %v841
        %v1041 = vunpack.c.l.b16 %v842
        %v1042 = vunpack.c.h.b16 %v842
        %v1043 = vunpack.c.l.b16 %v843
        %v1044 = vunpack.c.h.b16 %v843
        %v1045 = vunpack.c.l.b16 %v844
        %v1046 = vunpack.c.h.b16 %v844
        %v1047 = vunpack.c.l.b16 %v845
        %v1048 = vunpack.c.h.b16 %v845
        %v1049 = vunpack.c.l.b16 %v846
        %v1050 = vunpack.c.h.b16 %v846
        %v1051 = vunpack.c.l.b16 %v847
        %v1052 = vunpack.c.h.b16 %v847
        %v1053 = vunpack.c.l.b16 %v848
        %v1054 = vunpack.c.h.b16 %v848
        %v1055 = vunpack.c.l.b16 %v849
        %v1056 = vunpack.c.h.b16 %v849
        %v1057 = vunpack.c.l.b16 %v850
        %v1058 = vunpack.c.h.b16 %v850
        %v1059 = vunpack.c.l.b16 %v851
        %v1060 = vunpack.c.h.b16 %v851
        %v1061 = vunpack.c.l.b16 %v852
        %v1062 = vunpack.c.h.b16 %v852
        %v1063 = vunpack.c.l.b16 %v853
        %v1064 = vunpack.c.h.b16 %v853
        %v1065 = vunpack.c.l.b16 %v854
        %v1066 = vunpack.c.h.b16 %v854
        %v1067 = vunpack.c.l.b16 %v855
        %v1068 = vunpack.c.h.b16 %v855
        %v1069 = vunpack.c.l.b16 %v856
        %v1070 = vunpack.c.h.b16 %v856
        %v1071 = vunpack.c.l.b16 %v857
        %v1072 = vunpack.c.h.b16 %v857
        %v1073 = vunpack.c.l.b16 %v858
        %v1074 = vunpack.c.h.b16 %v858
        %v1075 = vunpack.c.l.b16 %v859
        %v1076 = vunpack.c.h.b16 %v859
        %v1077 = vunpack.c.l.b16 %v860
        %v1078 = vunpack.c.h.b16 %v860
        %v1079 = vunpack.c.l.b16 %v861
        %v1080 = vunpack.c.h.b16 %v861
        %v1081 = vunpack.c.l.b16 %v862
        %v1082 = vunpack.c.h.b16 %v862
        %v1083 = vunpack.c.l.b16 %v863
        %v1084 = vunpack.c.h.b16 %v863
        %v1085 = vunpack.c.l.b16 %v864
        %v1086 = vunpack.c.h.b16 %v864
        %v1087 = vunpack.c.l.b16 %v865
        %v1088 = vunpack.c.h.b16 %v865
        %v1089 = vunpack.c.l.b16 %v866
        %v1090 = vunpack.c.h.b16 %v866
        %v1091 = vunpack.c.l.b16 %v867
        %v1092 = vunpack.c.h.b16 %v867
        %v1093 = vunpack.c.l.b16 %v868
        %v1094 = vunpack.c.h.b16 %v868
        %v1095 = vunpack.c.l.b16 %v869
        %v1096 = vunpack.c.h.b16 %v869
        %v1097 = vunpack.c.l.b16 %v870
        %v1098 = vunpack.c.h.b16 %v870
        %v1099 = vunpack.c.l.b16 %v871
        %v1100 = vunpack.c.h.b16 %v871
        %v1101 = vunpack.c.l.b16 %v872
        %v1102 = vunpack.c.h.b16 %v872
        %v1103 = vunpack.c.l.b16 %v873
        %v1104 = vunpack.c.h.b16 %v873
        %v1105 = vunpack.c.l.b16 %v874
        %v1106 = vunpack.c.h.b16 %v874
        %v1107 = vunpack.c.l.b16 %v875
        %v1108 = vunpack.c.h.b16 %v875
        %v1109 = vunpack.c.l.b16 %v876
        %v1110 = vunpack.c.h.b16 %v876
        %v1111 = vunpack.c.l.b16 %v877
        %v1112 = vunpack.c.h.b16 %v877
        %v1113 = vpack.c.b16 %v993, %v985
        %v1114 = vpack.c.b16 %v994, %v986
        %v1115 = vpack.c.b16 %v995, %v987
        %v1116 = vpack.c.b16 %v996, %v988
        %v1117 = vpack.c.b16 %v997, %v989
        %v1118 = vpack.c.b16 %v998, %v990
        %v1119 = vpack.c.b16 %v999, %v991
        %v1120 = vpack.c.b16 %v1000, %v992
        %v1121 = vpack.c.b16 %v1009, %v1001
        %v1122 = vpack.c.b16 %v1010, %v1002
        %v1123 = vpack.c.b16 %v1011, %v1003
        %v1124 = vpack.c.b16 %v1012, %v1004
        %v1125 = vpack.c.b16 %v1013, %v1005
        %v1126 = vpack.c.b16 %v1014, %v1006
        %v1127 = vpack.c.b16 %v1015, %v1007
        %v1128 = vpack.c.b16 %v1016, %v1008
        %v1129 = vpack.c.b16 %v1025, %v1017
        %v1130 = vpack.c.b16 %v1026, %v1018
        %v1131 = vpack.c.b16 %v1027, %v1019
        %v1132 = vpack.c.b16 %v1028, %v1020
        %v1133 = vpack.c.b16 %v1029, %v1021
        %v1134 = vpack.c.b16 %v1030, %v1022
        %v1135 = vpack.c.b16 %v1031, %v1023
        %v1136 = vpack.c.b16 %v1032, %v1024
        %v1137 = vpack.c.b16 %v1041, %v1033
        %v1138 = vpack.c.b16 %v1042, %v1034
        %v1139 = vpack.c.b16 %v1043, %v1035
        %v1140 = vpack.c.b16 %v1044, %v1036
        %v1141 = vpack.c.b16 %v1045, %v1037
        %v1142 = vpack.c.b16 %v1046, %v1038
        %v1143 = vpack.c.b16 %v1047, %v1039
        %v1144 = vpack.c.b16 %v1048, %v1040
        %v1145 = vpack.c.b16 %v1057, %v1049
        %v1146 = vpack.c.b16 %v1058, %v1050
        %v1147 = vpack.c.b16 %v1059, %v1051
        %v1148 = vpack.c.b16 %v1060, %v1052
        %v1149 = vpack.c.b16 %v1061, %v1053
        %v1150 = vpack.c.b16 %v1062, %v1054
        %v1151 = vpack.c.b16 %v1063, %v1055
        %v1152 = vpack.c.b16 %v1064, %v1056
        %v1153 = vpack.c.b16 %v1073, %v1065
        %v1154 = vpack.c.b16 %v1074, %v1066
        %v1155 = vpack.c.b16 %v1075, %v1067
        %v1156 = vpack.c.b16 %v1076, %v1068
        %v1157 = vpack.c.b16 %v1077, %v1069
        %v1158 = vpack.c.b16 %v1078, %v1070
        %v1159 = vpack.c.b16 %v1079, %v1071
        %v1160 = vpack.c.b16 %v1080, %v1072
        %v1161 = vpack.c.b16 %v1089, %v1081
        %v1162 = vpack.c.b16 %v1090, %v1082
        %v1163 = vpack.c.b16 %v1091, %v1083
        %v1164 = vpack.c.b16 %v1092, %v1084
        %v1165 = vpack.c.b16 %v1093, %v1085
        %v1166 = vpack.c.b16 %v1094, %v1086
        %v1167 = vpack.c.b16 %v1095, %v1087
        %v1168 = vpack.c.b16 %v1096, %v1088
        %v1169 = vpack.c.b16 %v1105, %v1097
        %v1170 = vpack.c.b16 %v1106, %v1098
        %v1171 = vpack.c.b16 %v1107, %v1099
        %v1172 = vpack.c.b16 %v1108, %v1100
        %v1173 = vpack.c.b16 %v1109, %v1101
        %v1174 = vpack.c.b16 %v1110, %v1102
        %v1175 = vpack.c.b16 %v1111, %v1103
        %v1176 = vpack.c.b16 %v1112, %v1104
        %1241 = vmatprep.subr.bf16.mxu0 %v1170
        %1242 = vmatpush1.bf16.msra.mxu0 %v1169
        %1243 = vmatprep.subr.bf16.mxu0 %v1162
        %1244 = vmatpush1.bf16.msra.mxu0 %v1161
        %1245 = vmatprep.subr.bf16.mxu0 %v1154
        %1246 = vmatpush1.bf16.msra.mxu0 %v1153
        %1247 = vmatprep.subr.bf16.mxu0 %v1146
        %1248 = vmatpush1.bf16.msra.mxu0 %v1145
        %1249 = vmatprep.subr.bf16.mxu0 %v1138
        %1250 = vmatpush1.bf16.msra.mxu0 %v1137
        %1251 = vmatprep.subr.bf16.mxu0 %v1130
        %1252 = vmatpush1.bf16.msra.mxu0 %v1129
        %1253 = vmatprep.subr.bf16.mxu0 %v1122
        %1254 = vmatpush1.bf16.msra.mxu0 %v1121
        %1255 = vmatprep.subr.bf16.mxu0 %v1114
        %1256 = vmatpush1.bf16.msra.mxu0 %v1113
        %1257 = vmatprep.subr.bf16.mxu0 0
        %1258 = vmatpush2.bf16.msra.mxu0 0
        %1259 = vmatprep.subr.bf16.mxu0 0
        %1260 = vmatpush2.bf16.msra.mxu0 0
        %1261 = vmatprep.subr.bf16.mxu0 0
        %1262 = vmatpush2.bf16.msra.mxu0 0
        %1263 = vmatprep.subr.bf16.mxu0 0
        %1264 = vmatpush2.bf16.msra.mxu0 0
        %1265 = vmatprep.subr.bf16.mxu0 0
        %1266 = vmatpush2.bf16.msra.mxu0 0
        %1267 = vmatprep.subr.bf16.mxu0 0
        %1268 = vmatpush2.bf16.msra.mxu0 0
        %1269 = vmatprep.subr.bf16.mxu0 0
        %1270 = vmatpush2.bf16.msra.mxu0 0
        %1271 = vmatprep.subr.bf16.mxu0 0
        %1272 = vmatpush2.bf16.msra.mxu0 0
        %1273 = vmatprep.mubr.bf16.mxu0 0
        %1274 = vmatmul.mubr.bf16.gmra.mxu0 %v879
        %v1275 = vpop.f32.mrf.mxu0
        %v1276 = vadd.f32 %v884, %v1275
        %v1277 = vpop.f32.mrf.mxu0
        %v1278 = vadd.f32 %v888, %v1277
        %v1279 = vpop.f32.mrf.mxu0
        %v1280 = vpop.f32.mrf.mxu0
        %1281 = vdwg.mxu0
        %1282 = vmatprep.subr.bf16.mxu0 %v1172
        %1283 = vmatpush1.bf16.msra.mxu0 %v1171
        %1284 = vmatprep.subr.bf16.mxu0 %v1164
        %1285 = vmatpush1.bf16.msra.mxu0 %v1163
        %1286 = vmatprep.subr.bf16.mxu0 %v1156
        %1287 = vmatpush1.bf16.msra.mxu0 %v1155
        %1288 = vmatprep.subr.bf16.mxu0 %v1148
        %1289 = vmatpush1.bf16.msra.mxu0 %v1147
        %1290 = vmatprep.subr.bf16.mxu0 %v1140
        %1291 = vmatpush1.bf16.msra.mxu0 %v1139
        %1292 = vmatprep.subr.bf16.mxu0 %v1132
        %1293 = vmatpush1.bf16.msra.mxu0 %v1131
        %1294 = vmatprep.subr.bf16.mxu0 %v1124
        %1295 = vmatpush1.bf16.msra.mxu0 %v1123
        %1296 = vmatprep.subr.bf16.mxu0 %v1116
        %1297 = vmatpush1.bf16.msra.mxu0 %v1115
        %1298 = vmatprep.subr.bf16.mxu0 0
        %1299 = vmatpush2.bf16.msra.mxu0 0
        %1300 = vmatprep.subr.bf16.mxu0 0
        %1301 = vmatpush2.bf16.msra.mxu0 0
        %1302 = vmatprep.subr.bf16.mxu0 0
        %1303 = vmatpush2.bf16.msra.mxu0 0
        %1304 = vmatprep.subr.bf16.mxu0 0
        %1305 = vmatpush2.bf16.msra.mxu0 0
        %1306 = vmatprep.subr.bf16.mxu0 0
        %1307 = vmatpush2.bf16.msra.mxu0 0
        %1308 = vmatprep.subr.bf16.mxu0 0
        %1309 = vmatpush2.bf16.msra.mxu0 0
        %1310 = vmatprep.subr.bf16.mxu0 0
        %1311 = vmatpush2.bf16.msra.mxu0 0
        %1312 = vmatprep.subr.bf16.mxu0 0
        %1313 = vmatpush2.bf16.msra.mxu0 0
        %1314 = vmatprep.mubr.bf16.mxu0 0
        %1315 = vmatmul.mubr.bf16.gmra.mxu0 %v879
        %v1316 = vpop.f32.mrf.mxu0
        %v1317 = vadd.f32 %v892, %v1316
        %v1318 = vpop.f32.mrf.mxu0
        %v1319 = vadd.f32 %v896, %v1318
        %v1320 = vpop.f32.mrf.mxu0
        %v1321 = vpop.f32.mrf.mxu0
        %1322 = vdwg.mxu0
        %1323 = vmatprep.subr.bf16.mxu0 %v1174
        %1324 = vmatpush1.bf16.msra.mxu0 %v1173
        %1325 = vmatprep.subr.bf16.mxu0 %v1166
        %1326 = vmatpush1.bf16.msra.mxu0 %v1165
        %1327 = vmatprep.subr.bf16.mxu0 %v1158
        %1328 = vmatpush1.bf16.msra.mxu0 %v1157
        %1329 = vmatprep.subr.bf16.mxu0 %v1150
        %1330 = vmatpush1.bf16.msra.mxu0 %v1149
        %1331 = vmatprep.subr.bf16.mxu0 %v1142
        %1332 = vmatpush1.bf16.msra.mxu0 %v1141
        %1333 = vmatprep.subr.bf16.mxu0 %v1134
        %1334 = vmatpush1.bf16.msra.mxu0 %v1133
        %1335 = vmatprep.subr.bf16.mxu0 %v1126
        %1336 = vmatpush1.bf16.msra.mxu0 %v1125
        %1337 = vmatprep.subr.bf16.mxu0 %v1118
        %1338 = vmatpush1.bf16.msra.mxu0 %v1117
        %1339 = vmatprep.subr.bf16.mxu0 0
        %1340 = vmatpush2.bf16.msra.mxu0 0
        %1341 = vmatprep.subr.bf16.mxu0 0
        %1342 = vmatpush2.bf16.msra.mxu0 0
        %1343 = vmatprep.subr.bf16.mxu0 0
        %1344 = vmatpush2.bf16.msra.mxu0 0
        %1345 = vmatprep.subr.bf16.mxu0 0
        %1346 = vmatpush2.bf16.msra.mxu0 0
        %1347 = vmatprep.subr.bf16.mxu0 0
        %1348 = vmatpush2.bf16.msra.mxu0 0
        %1349 = vmatprep.subr.bf16.mxu0 0
        %1350 = vmatpush2.bf16.msra.mxu0 0
        %1351 = vmatprep.subr.bf16.mxu0 0
        %1352 = vmatpush2.bf16.msra.mxu0 0
        %1353 = vmatprep.subr.bf16.mxu0 0
        %1354 = vmatpush2.bf16.msra.mxu0 0
        %1355 = vmatprep.mubr.bf16.mxu0 0
        %1356 = vmatmul.mubr.bf16.gmra.mxu0 %v879
        %v1357 = vpop.f32.mrf.mxu0
        %v1358 = vadd.f32 %v900, %v1357
        %v1359 = vpop.f32.mrf.mxu0
        %v1360 = vadd.f32 %v904, %v1359
        %v1361 = vpop.f32.mrf.mxu0
        %v1362 = vpop.f32.mrf.mxu0
        %1363 = vdwg.mxu0
        %1364 = vmatprep.subr.bf16.mxu0 %v1176
        %1365 = vmatpush1.bf16.msra.mxu0 %v1175
        %1366 = vmatprep.subr.bf16.mxu0 %v1168
        %1367 = vmatpush1.bf16.msra.mxu0 %v1167
        %1368 = vmatprep.subr.bf16.mxu0 %v1160
        %1369 = vmatpush1.bf16.msra.mxu0 %v1159
        %1370 = vmatprep.subr.bf16.mxu0 %v1152
        %1371 = vmatpush1.bf16.msra.mxu0 %v1151
        %1372 = vmatprep.subr.bf16.mxu0 %v1144
        %1373 = vmatpush1.bf16.msra.mxu0 %v1143
        %1374 = vmatprep.subr.bf16.mxu0 %v1136
        %1375 = vmatpush1.bf16.msra.mxu0 %v1135
        %1376 = vmatprep.subr.bf16.mxu0 %v1128
        %1377 = vmatpush1.bf16.msra.mxu0 %v1127
        %1378 = vmatprep.subr.bf16.mxu0 %v1120
        %1379 = vmatpush1.bf16.msra.mxu0 %v1119
        %1380 = vmatprep.subr.bf16.mxu0 0
        %1381 = vmatpush2.bf16.msra.mxu0 0
        %1382 = vmatprep.subr.bf16.mxu0 0
        %1383 = vmatpush2.bf16.msra.mxu0 0
        %1384 = vmatprep.subr.bf16.mxu0 0
        %1385 = vmatpush2.bf16.msra.mxu0 0
        %1386 = vmatprep.subr.bf16.mxu0 0
        %1387 = vmatpush2.bf16.msra.mxu0 0
        %1388 = vmatprep.subr.bf16.mxu0 0
        %1389 = vmatpush2.bf16.msra.mxu0 0
        %1390 = vmatprep.subr.bf16.mxu0 0
        %1391 = vmatpush2.bf16.msra.mxu0 0
        %1392 = vmatprep.subr.bf16.mxu0 0
        %1393 = vmatpush2.bf16.msra.mxu0 0
        %1394 = vmatprep.subr.bf16.mxu0 0
        %1395 = vmatpush2.bf16.msra.mxu0 0
        %1396 = vmatprep.mubr.bf16.mxu0 0
        %1397 = vmatmul.mubr.bf16.gmra.mxu0 %v879
        %v1398 = vpop.f32.mrf.mxu0
        %v1399 = vadd.f32 %v908, %v1398
        %v1400 = vpop.f32.mrf.mxu0
        %v1401 = vadd.f32 %v912, %v1400
        %v1402 = vpop.f32.mrf.mxu0
        %v1403 = vpop.f32.mrf.mxu0
        %1404 = vdwg.mxu0
        %v1405 = vmax.f32 %v1276, 0.0
        %v1406 = vmax.f32 %v1278, 0.0
        %v1407 = vmax.f32 %v1317, 0.0
        %v1408 = vmax.f32 %v1319, 0.0
        %v1409 = vmax.f32 %v1358, 0.0
        %v1410 = vmax.f32 %v1360, 0.0
        %v1411 = vmax.f32 %v1399, 0.0
        %v1412 = vmax.f32 %v1401, 0.0
        %v1413 = vrot.slane %v1405, 4
        %v1414 = vmax.f32 %v1405, %v1413
        %v1415 = vrot.slane %v1414, 2
        %v1416 = vmax.f32 %v1414, %v1415
        %v1417 = vrot.slane %v1416, 1
        %v1418 = vmax.f32 %v1416, %v1417
        %v1419 = vrot.slane %v1406, 4
        %v1420 = vmax.f32 %v1406, %v1419
        %v1421 = vrot.slane %v1420, 2
        %v1422 = vmax.f32 %v1420, %v1421
        %v1423 = vrot.slane %v1422, 1
        %v1424 = vmax.f32 %v1422, %v1423
        %v1425 = vrot.slane %v1407, 4
        %v1426 = vmax.f32 %v1407, %v1425
        %v1427 = vrot.slane %v1426, 2
        %v1428 = vmax.f32 %v1426, %v1427
        %v1429 = vrot.slane %v1428, 1
        %v1430 = vmax.f32 %v1428, %v1429
        %v1431 = vrot.slane %v1408, 4
        %v1432 = vmax.f32 %v1408, %v1431
        %v1433 = vrot.slane %v1432, 2
        %v1434 = vmax.f32 %v1432, %v1433
        %v1435 = vrot.slane %v1434, 1
        %v1436 = vmax.f32 %v1434, %v1435
        %v1437 = vrot.slane %v1409, 4
        %v1438 = vmax.f32 %v1409, %v1437
        %v1439 = vrot.slane %v1438, 2
        %v1440 = vmax.f32 %v1438, %v1439
        %v1441 = vrot.slane %v1440, 1
        %v1442 = vmax.f32 %v1440, %v1441
        %v1443 = vrot.slane %v1410, 4
        %v1444 = vmax.f32 %v1410, %v1443
        %v1445 = vrot.slane %v1444, 2
        %v1446 = vmax.f32 %v1444, %v1445
        %v1447 = vrot.slane %v1446, 1
        %v1448 = vmax.f32 %v1446, %v1447
        %v1449 = vrot.slane %v1411, 4
        %v1450 = vmax.f32 %v1411, %v1449
        %v1451 = vrot.slane %v1450, 2
        %v1452 = vmax.f32 %v1450, %v1451
        %v1453 = vrot.slane %v1452, 1
        %v1454 = vmax.f32 %v1452, %v1453
        %v1455 = vrot.slane %v1412, 4
        %v1456 = vmax.f32 %v1412, %v1455
        %v1457 = vrot.slane %v1456, 2
        %v1458 = vmax.f32 %v1456, %v1457
        %v1459 = vrot.slane %v1458, 1
        %v1460 = vmax.f32 %v1458, %v1459
        %p1461 = scmp.eq.s32.totalorder %s38, 0
        // Predicated region
        $region89: #{tpu_custom_call.1} parent=63 // pred_check
          %p1462 = pneg %p1461
        $region90: #{tpu_custom_call.1} parent=63 // pred_check_branch
          %1464 = sbr.rel (%p1462) target = $region92
        $region91: #{tpu_custom_call.1} parent=63 // pred_region
          %v1473 = vcombine.low %v1418, %v1424
          %v1474 = vcombine.low %v1430, %v1436
          %v1475 = vcombine.low %v1442, %v1448
          %v1476 = vcombine.low %v1454, %v1460
          %v1478 = vunpack.c.l.s4 1966171168
          %v1479 = vunpack.c.0.s8 %v1478
          %v1480 = vlaneseq
          %v1481 = vshrl.u32 %v1480, 7
          %v1482 = vsub.s32 %v1479, %v1481
          %v1483 = vrot.slane %v1473, %v1482
          %v1485 = vunpack.c.l.s4 1966171168
          %v1486 = vunpack.c.0.s8 %v1485
          %v1487 = vlaneseq
          %v1488 = vshrl.u32 %v1487, 7
          %v1489 = vsub.s32 %v1486, %v1488
          %v1490 = vrot.slane %v1474, %v1489
          %v1492 = vunpack.c.l.s4 1966171168
          %v1493 = vunpack.c.0.s8 %v1492
          %v1494 = vlaneseq
          %v1495 = vshrl.u32 %v1494, 7
          %v1496 = vsub.s32 %v1493, %v1495
          %v1497 = vrot.slane %v1475, %v1496
          %v1499 = vunpack.c.l.s4 1966171168
          %v1500 = vunpack.c.0.s8 %v1499
          %v1501 = vlaneseq
          %v1502 = vshrl.u32 %v1501, 7
          %v1503 = vsub.s32 %v1500, %v1502
          %v1504 = vrot.slane %v1476, %v1503
          %v1505 = vcombine.low %v1483, %v1490
          %v1506 = vcombine.low %v1497, %v1504
          %v1508 = vunpack.c.l.s4 1966171168
          %v1509 = vunpack.c.0.s8 %v1508
          %v1510 = vlaneseq
          %v1511 = vshrl.u32 %v1510, 7
          %v1512 = vsub.s32 %v1509, %v1511
          %v1513 = vrot.slane %v1505, %v1512
          %v1515 = vunpack.c.l.s4 1966171168
          %v1516 = vunpack.c.0.s8 %v1515
          %v1517 = vlaneseq
          %v1518 = vshrl.u32 %v1517, 7
          %v1519 = vsub.s32 %v1516, %v1518
          %v1520 = vrot.slane %v1506, %v1519
          %v1521 = vcombine.low %v1513, %v1520
          %1523 = vst [vmem:[%s499] sm:$0xff] %v1521
        $region92: #{tpu_custom_call.1} parent=63 // pred_fallthru
          _
        %p1524 = scmp.gt.s32.totalorder %s38, 0
        // Predicated region
        $region93: #{tpu_custom_call.1} parent=63 // pred_check
          %p1525 = pneg %p1524
        $region94: #{tpu_custom_call.1} parent=63 // pred_check_branch
          %1527 = sbr.rel (%p1525) target = $region96
        $region95: #{tpu_custom_call.1} parent=63 // pred_region
          %v1528 = vld [vmem:[%s499] sm:$0xff]
          %v1537 = vcombine.low %v1418, %v1424
          %v1538 = vcombine.low %v1430, %v1436
          %v1539 = vcombine.low %v1442, %v1448
          %v1540 = vcombine.low %v1454, %v1460
          %v1542 = vunpack.c.l.s4 1966171168
          %v1543 = vunpack.c.0.s8 %v1542
          %v1544 = vlaneseq
          %v1545 = vshrl.u32 %v1544, 7
          %v1546 = vsub.s32 %v1543, %v1545
          %v1547 = vrot.slane %v1537, %v1546
          %v1549 = vunpack.c.l.s4 1966171168
          %v1550 = vunpack.c.0.s8 %v1549
          %v1551 = vlaneseq
          %v1552 = vshrl.u32 %v1551, 7
          %v1553 = vsub.s32 %v1550, %v1552
          %v1554 = vrot.slane %v1538, %v1553
          %v1556 = vunpack.c.l.s4 1966171168
          %v1557 = vunpack.c.0.s8 %v1556
          %v1558 = vlaneseq
          %v1559 = vshrl.u32 %v1558, 7
          %v1560 = vsub.s32 %v1557, %v1559
          %v1561 = vrot.slane %v1539, %v1560
          %v1563 = vunpack.c.l.s4 1966171168
          %v1564 = vunpack.c.0.s8 %v1563
          %v1565 = vlaneseq
          %v1566 = vshrl.u32 %v1565, 7
          %v1567 = vsub.s32 %v1564, %v1566
          %v1568 = vrot.slane %v1540, %v1567
          %v1569 = vcombine.low %v1547, %v1554
          %v1570 = vcombine.low %v1561, %v1568
          %v1572 = vunpack.c.l.s4 1966171168
          %v1573 = vunpack.c.0.s8 %v1572
          %v1574 = vlaneseq
          %v1575 = vshrl.u32 %v1574, 7
          %v1576 = vsub.s32 %v1573, %v1575
          %v1577 = vrot.slane %v1569, %v1576
          %v1579 = vunpack.c.l.s4 1966171168
          %v1580 = vunpack.c.0.s8 %v1579
          %v1581 = vlaneseq
          %v1582 = vshrl.u32 %v1581, 7
          %v1583 = vsub.s32 %v1580, %v1582
          %v1584 = vrot.slane %v1570, %v1583
          %v1585 = vcombine.low %v1577, %v1584
          %v1587 = vmax.f32 %v1528, %v1585
          %1588 = vst [vmem:[%s499] sm:$0xff] %v1587
        $region96: #{tpu_custom_call.1} parent=63 // pred_fallthru
          _
        %s1589 = sand.u32 %s300, 1
        %s1590 = scalar_lea.sflag [#allocation4], %s1589
        %s1591 = sand.u32 %s300, 1
        %s1592 = smul.addr %s1591, 8
        %s1593 = scalar_lea.vmem [#allocation13], %s1592
        // Predicated region
        $region97: #{tpu_custom_call.1} parent=63 // pred_check
          %p1594 = pneg %p310
        $region98: #{tpu_custom_call.1} parent=63 // pred_check_branch
          %1596 = sbr.rel (%p1594) target = $region100
        $region99: #{tpu_custom_call.1} parent=63 // pred_region
          %s1598 = ssub.s32 128, 128
          %1599 = vsyncadd %s1590, %s1598
          %s1600 = smul.addr %s37, 8
          %s1601 = smul.addr %s36, 16
          %s1602 = sadd.s32 %s1600, %s1601
          %s1603 = smul.addr %s1602, 16
          %s1604 = scalar_lea.hbm %s11, %s1603
          %s1606 = sshll.u32 %s1593, 4
          %s1607 = int_to_ptr.vmem [resolvable:$true] %s1606
          %1609 = dma.vmem_to_hbm [thread:$0]  %s1607, 128, %s1604, %s1590
        $region100: #{tpu_custom_call.1} parent=63 // pred_fallthru
          _
      $region64: #{tpu_custom_call.1} parent=5 // pred_fallthru
        _
      %p1610 = scmp.le.s32.totalorder 2, %s26
      // Predicated region
      $region101: #{tpu_custom_call.1} parent=5 // pred_check
        %p1611 = pneg %p1610
      $region102: #{tpu_custom_call.1} parent=5 // pred_check_branch
        %1613 = sbr.rel (%p1611) target = $region104
      $region103: #{tpu_custom_call.1} parent=5 // pred_region
        %s1614 = ssub.s32 %s26, 2
        // Predicated region
        $region105: #{tpu_custom_call.1} parent=103 // pred_check
          %p1615 = pneg %p316
        $region106: #{tpu_custom_call.1} parent=103 // pred_check_branch
          %1617 = sbr.rel (%p1615) target = $region108
        $region107: #{tpu_custom_call.1} parent=103 // pred_region
          %s1618 = sand.u32 %s301, 1
          %s1619 = scalar_lea.sflag [#allocation4], %s1618
          %s1620 = sand.u32 %s301, 1
          %s1621 = smul.addr %s1620, 8
          %s1622 = scalar_lea.vmem [#allocation13], %s1621
          %1623 = dma.done %s1619, 128
        $region108: #{tpu_custom_call.1} parent=103 // pred_fallthru
          _
      $region104: #{tpu_custom_call.1} parent=5 // pred_fallthru
        _
    $region6: #{tpu_custom_call.1} parent=1 // loop_footer
      %s30 = sadd.s32 1, %s26
    $region7: #{tpu_custom_call.1} parent=1 // loop_footer_branch
      %25 = sbr.rel target = $region3
    $region8: #{tpu_custom_call.1} parent=1 // loop_exit
      _
    %1624 = vsyncpa [#allocation3], 1
    %s1625 = scalar_lea.sflag [#allocation3], 1
    %1626 = vsyncpa %s1625, 1
    %1627 = vsyncpa [#allocation6], 1
    %1628 = vsyncpa [#allocation9], 1
    %1629 = vsyncpa [#allocation12], 1
    %1630 = vsyncpa [#allocation4], 1
    %s1631 = scalar_lea.sflag [#allocation4], 1
    %1632 = vsyncpa %s1631, 1

</llo_original>
